<compile_context>
chip_gen: v7x
topology: tpu7x:2x2x1
jax: 0.10.0
libtpu: 0.0.40
codegen_flags: <defaults>
</compile_context>

<pallas_src>
import jax
import jax.numpy as jnp
from jax.experimental import pallas as pl
from jax.experimental.pallas import tpu as pltpu

LANE = 128
NEG_INF = -1e30


def _round_up(x, m):
    return ((x + m - 1) // m) * m


def _pick_tile_b(B, max_tile=256):
    """Batch-tile rows per grid step."""
    if B <= 16:
        # Single block spanning the full batch dim (always a legal block shape).
        return B
    # >=2 grid steps so both v7x TensorCores get work; cap at 256 rows (full
    # v6e MXU pass, amortizes per-step overhead); multiple of 16 keeps bf16
    # sublane packing dense.
    half = -(-B // 2)
    return min(max_tile, _round_up(half, 16))


def discriminator_kernel(x_ref, w1_ref, b1_ref, w2_ref, b2_ref, o_ref):
    # ---- Linear 1 + ReLU: cast x f32->bf16 on the VPU (hidden under the MXU),
    #      bf16 MXU matmul with f32 accumulation ----
    x = x_ref[...].astype(jnp.bfloat16)
    h = jnp.dot(x, w1_ref[...], preferred_element_type=jnp.float32)
    h = jnp.maximum(h + b1_ref[...], 0.0)                  # (tile_b, 1024) f32

    # ---- Linear 2 (output lane-padded to a multiple of 128) ----
    logits = jnp.dot(h.astype(jnp.bfloat16), w2_ref[...],
                     preferred_element_type=jnp.float32)
    logits = logits + b2_ref[...]                          # padded cols -> -1e30 (f32)

    # ---- Softmax over classes (dim=1), numerically stable, all f32 ----
    m = jnp.max(logits, axis=-1, keepdims=True)
    e = jnp.exp(logits - m)                                # padded cols -> exactly 0
    denom = jnp.sum(e, axis=-1, keepdims=True)
    inv = pl.reciprocal(denom, approx=True)                # EUP slot, ~free
    o_ref[...] = (e * inv).astype(o_ref.dtype)


def prepare_params(w1, b1, w2, b2):
    """One-time weight prep (outside the per-forward path): lane-pad the
    classifier to a multiple of 128 columns, cast matmul weights to bf16,
    keep biases f32.  Padded bias entries are -1e30 so softmax ignores them."""
    hidden = w1.shape[1]
    C = w2.shape[1]
    C_pad = _round_up(C, LANE)
    w2_p = jnp.pad(w2, ((0, 0), (0, C_pad - C)))
    b2_p = jnp.pad(b2, ((0, C_pad - C),), constant_values=NEG_INF)
    return (w1.astype(jnp.bfloat16),
            b1.reshape(1, hidden).astype(jnp.float32),
            w2_p.astype(jnp.bfloat16),
            b2_p.reshape(1, C_pad).astype(jnp.float32),
            C)


def discriminator_forward(x_nchw, params, *, max_tile_b=256):
    """x_nchw: (B, 1, in_size, in_size) float32. Returns (B, out_classes) f32."""
    w1_bf, b1_r, w2_bf, b2_r, out_classes = params
    B = x_nchw.shape[0]
    x_flat = x_nchw.reshape(B, -1)                         # nn.Flatten()
    if x_flat.dtype != jnp.float32:
        x_flat = x_flat.astype(jnp.float32)
    F = x_flat.shape[1]
    hidden = w1_bf.shape[1]
    C_pad = w2_bf.shape[1]
    assert F == w1_bf.shape[0]

    tile_b = _pick_tile_b(B, max_tile_b)
    grid = (pl.cdiv(B, tile_b),)   # ragged last tile masked by Pallas; no x pad pass

    # VMEM budget: resident weights (worst case 2 buffers) + biases + double-
    # buffered f32 x/out tiles, 1.5x headroom; never below the 32 MiB default.
    resident = 2 * (F * hidden + hidden * C_pad) * 2 + (hidden + C_pad) * 4
    streamed = 2 * tile_b * (F + C_pad) * 4
    vmem_limit = max(32 << 20, int(1.5 * (resident + streamed)) + (2 << 20))

    def build(weight_buffers):
        res_kw = ({} if weight_buffers is None
                  else dict(pipeline_mode=pl.Buffered(weight_buffers)))
        return pl.pallas_call(
            discriminator_kernel,
            out_shape=jax.ShapeDtypeStruct((B, C_pad), jnp.float32),
            grid_spec=pltpu.PrefetchScalarGridSpec(
                num_scalar_prefetch=0,
                grid=grid,
                in_specs=[
                    pl.BlockSpec((tile_b, F), lambda i: (i, 0)),               # x (streamed f32)
                    pl.BlockSpec((F, hidden), lambda i: (0, 0), **res_kw),     # w1 (resident bf16)
                    pl.BlockSpec((1, hidden), lambda i: (0, 0), **res_kw),     # b1 (resident f32)
                    pl.BlockSpec((hidden, C_pad), lambda i: (0, 0), **res_kw), # w2 (resident bf16)
                    pl.BlockSpec((1, C_pad), lambda i: (0, 0), **res_kw),      # b2 (resident f32)
                ],
                out_specs=pl.BlockSpec((tile_b, C_pad), lambda i: (i, 0)),
            ),
            compiler_params=pltpu.CompilerParams(
                dimension_semantics=("parallel",),   # batch tiles across v7x TCs
                vmem_limit_bytes=vmem_limit,
            ),
        )

    try:
        # Preferred: single-buffered resident weights (halves their VMEM cost).
        out = build(1)(x_flat, w1_bf, b1_r, w2_bf, b2_r)
    except Exception:
        # Fallback: default double-buffering (previous, known-good config).
        out = build(None)(x_flat, w1_bf, b1_r, w2_bf, b2_r)

    return out[:, :out_classes]


def init_params(key, in_size, hidden, out_classes):
    """Deterministic synthetic parameters (shapes match the torch module)."""
    k1, k2, k3, k4 = jax.random.split(key, 4)
    f = in_size * in_size
    # torch Linear default init ~ U(-1/sqrt(fan_in), 1/sqrt(fan_in))
    w1 = jax.random.uniform(k1, (f, hidden), jnp.float32,
                            minval=-1.0, maxval=1.0) / jnp.sqrt(f)
    b1 = jax.random.uniform(k2, (hidden,), jnp.float32,
                            minval=-1.0, maxval=1.0) / jnp.sqrt(f)
    w2 = jax.random.uniform(k3, (hidden, out_classes), jnp.float32,
                            minval=-1.0, maxval=1.0) / jnp.sqrt(hidden)
    b2 = jax.random.uniform(k4, (out_classes,), jnp.float32,
                            minval=-1.0, maxval=1.0) / jnp.sqrt(hidden)
    return w1, b1, w2, b2


def reference_forward(x_nchw, w1, b1, w2, b2):
    xf = x_nchw.reshape(x_nchw.shape[0], -1)
    h = jnp.maximum(xf @ w1 + b1, 0.0)
    return jax.nn.softmax(h @ w2 + b2, axis=1)


if __name__ == "__main__":
    in_size = 16          # Discriminator(in_size=16, out_classes=10)
    hidden = 1024
    out_classes = 10
    batch = 2

    key = jax.random.PRNGKey(0)
    kx, kp = jax.random.split(key)
    x = jax.random.normal(kx, (batch, 1, in_size, in_size), jnp.float32)
    w1, b1, w2, b2 = init_params(kp, in_size, hidden, out_classes)

    params = prepare_params(w1, b1, w2, b2)   # one-time pad + bf16 cast
    out = discriminator_forward(x, params)
    out = jax.block_until_ready(out)

    # sanity: shape, softmax rows sum to ~1, and matches a pure-JAX f32 reference
    # (loose tolerances: bf16 matmuls + approx reciprocal)
    assert out.shape == (batch, out_classes)
    assert jnp.allclose(jnp.sum(out, axis=1), 1.0, atol=1e-2)
    ref = reference_forward(x, w1, b1, w2, b2)
    assert jnp.allclose(out, ref, atol=3e-2), float(jnp.max(jnp.abs(out - ref)))

    print("KERNEL_OK")
</pallas_src>

<mosaic_0001>
module attributes {stable_mosaic.version = 11 : i64} {
  func.func @discriminator_kernel(%arg0: i32, %arg1: memref<2x256xf32, #tpu.memory_space<vmem>>, %arg2: memref<256x1024xbf16, #tpu.memory_space<vmem>>, %arg3: memref<1x1024xf32, #tpu.memory_space<vmem>>, %arg4: memref<1024x128xbf16, #tpu.memory_space<vmem>>, %arg5: memref<1x128xf32, #tpu.memory_space<vmem>>, %arg6: memref<2x128xf32, #tpu.memory_space<vmem>>) attributes {dimension_semantics = [#tpu.dimension_semantics<parallel>], iteration_bounds = array<i64: 1>, scalar_prefetch = 0 : i64, scratch_operands = 0 : i64, tpu.core_type = #tpu.core_type<tc>, window_params = [{transform_indices = @transform_0, window_bounds = array<i64: 2, 256>}, {pipeline_mode = #tpu.pipeline_mode<synchronous>, transform_indices = @transform_1, window_bounds = array<i64: 256, 1024>}, {pipeline_mode = #tpu.pipeline_mode<synchronous>, transform_indices = @transform_2, window_bounds = array<i64: 1, 1024>}, {pipeline_mode = #tpu.pipeline_mode<synchronous>, transform_indices = @transform_3, window_bounds = array<i64: 1024, 128>}, {pipeline_mode = #tpu.pipeline_mode<synchronous>, transform_indices = @transform_4, window_bounds = array<i64: 1, 128>}, {transform_indices = @transform_5, window_bounds = array<i64: 2, 128>}]} {
    %c0 = arith.constant 0 : index
    %c0_0 = arith.constant 0 : index
    %0 = vector.load %arg1[%c0, %c0_0] : memref<2x256xf32, #tpu.memory_space<vmem>>, vector<2x256xf32>
    %1 = arith.truncf %0 : vector<2x256xf32> to vector<2x256xbf16>
    %c0_1 = arith.constant 0 : index
    %c0_2 = arith.constant 0 : index
    %2 = vector.load %arg2[%c0_1, %c0_2] : memref<256x1024xbf16, #tpu.memory_space<vmem>>, vector<256x1024xbf16>
    %cst = arith.constant dense<0.000000e+00> : vector<2x1024xf32>
    %3 = tpu.matmul %1, %2, %cst {dimension_numbers = #tpu.dot_dimension_numbers<[1], [0], [0], [1], [0, 0, 1, 1], [], []>} : vector<2x256xbf16>, vector<256x1024xbf16>, vector<2x1024xf32> -> vector<2x1024xf32>
    %c0_3 = arith.constant 0 : index
    %c0_4 = arith.constant 0 : index
    %4 = vector.load %arg3[%c0_3, %c0_4] : memref<1x1024xf32, #tpu.memory_space<vmem>>, vector<1x1024xf32>
    %5 = vector.broadcast %4 : vector<1x1024xf32> to vector<2x1024xf32>
    %6 = arith.addf %3, %5 : vector<2x1024xf32>
    %cst_5 = arith.constant 0.000000e+00 : f32
    %7 = vector.broadcast %cst_5 : f32 to vector<2x1024xf32>
    %8 = arith.maximumf %6, %7 : vector<2x1024xf32>
    %9 = arith.truncf %8 : vector<2x1024xf32> to vector<2x1024xbf16>
    %c0_6 = arith.constant 0 : index
    %c0_7 = arith.constant 0 : index
    %10 = vector.load %arg4[%c0_6, %c0_7] : memref<1024x128xbf16, #tpu.memory_space<vmem>>, vector<1024x128xbf16>
    %cst_8 = arith.constant dense<0.000000e+00> : vector<2x128xf32>
    %11 = tpu.matmul %9, %10, %cst_8 {dimension_numbers = #tpu.dot_dimension_numbers<[1], [0], [0], [1], [0, 0, 1, 1], [], []>} : vector<2x1024xbf16>, vector<1024x128xbf16>, vector<2x128xf32> -> vector<2x128xf32>
    %c0_9 = arith.constant 0 : index
    %c0_10 = arith.constant 0 : index
    %12 = vector.load %arg5[%c0_9, %c0_10] : memref<1x128xf32, #tpu.memory_space<vmem>>, vector<1x128xf32>
    %13 = vector.broadcast %12 : vector<1x128xf32> to vector<2x128xf32>
    %14 = arith.addf %11, %13 : vector<2x128xf32>
    %cst_11 = arith.constant dense<0xFF800000> : vector<2xf32>
    %15 = vector.multi_reduction <maximumf>, %14, %cst_11 [1] : vector<2x128xf32> to vector<2xf32>
    %16 = vector.shape_cast %15 : vector<2xf32> to vector<2x1xf32>
    %17 = vector.broadcast %16 : vector<2x1xf32> to vector<2x128xf32>
    %18 = arith.subf %14, %17 : vector<2x128xf32>
    %19 = math.exp %18 : vector<2x128xf32>
    %cst_12 = arith.constant dense<0.000000e+00> : vector<2xf32>
    %20 = vector.multi_reduction <add>, %19, %cst_12 [1] : vector<2x128xf32> to vector<2xf32>
    %21 = vector.shape_cast %20 : vector<2xf32> to vector<2x1xf32>
    %22 = tpu.reciprocal %21 {approx = true} : vector<2x1xf32> -> vector<2x1xf32>
    %23 = vector.broadcast %22 : vector<2x1xf32> to vector<2x128xf32>
    %24 = arith.mulf %19, %23 : vector<2x128xf32>
    %c0_13 = arith.constant 0 : index
    %c0_14 = arith.constant 0 : index
    %25 = vector.load %arg6[%c0_13, %c0_14] : memref<2x128xf32, #tpu.memory_space<vmem>>, vector<2x128xf32>
    tpu.vector_store %arg6[%c0_13, %c0_14], %24 {strides = array<i32>} : memref<2x128xf32, #tpu.memory_space<vmem>>, vector<2x128xf32>,
    return
  }
  func.func @transform_0(%arg0: i32) -> (i32, i32) {
    %c0_i32 = arith.constant 0 : i32
    %c0_i32_0 = arith.constant 0 : i32
    return %arg0, %c0_i32 : i32, i32
  }
  func.func @transform_1(%arg0: i32) -> (i32, i32) {
    %c0_i32 = arith.constant 0 : i32
    %c0_i32_0 = arith.constant 0 : i32
    %c0_i32_1 = arith.constant 0 : i32
    return %c0_i32, %c0_i32_0 : i32, i32
  }
  func.func @transform_2(%arg0: i32) -> (i32, i32) {
    %c0_i32 = arith.constant 0 : i32
    %c0_i32_0 = arith.constant 0 : i32
    %c0_i32_1 = arith.constant 0 : i32
    return %c0_i32, %c0_i32_0 : i32, i32
  }
  func.func @transform_3(%arg0: i32) -> (i32, i32) {
    %c0_i32 = arith.constant 0 : i32
    %c0_i32_0 = arith.constant 0 : i32
    %c0_i32_1 = arith.constant 0 : i32
    return %c0_i32, %c0_i32_0 : i32, i32
  }
  func.func @transform_4(%arg0: i32) -> (i32, i32) {
    %c0_i32 = arith.constant 0 : i32
    %c0_i32_0 = arith.constant 0 : i32
    %c0_i32_1 = arith.constant 0 : i32
    return %c0_i32, %c0_i32_0 : i32, i32
  }
  func.func @transform_5(%arg0: i32) -> (i32, i32) {
    %c0_i32 = arith.constant 0 : i32
    %c0_i32_0 = arith.constant 0 : i32
    return %arg0, %c0_i32 : i32, i32
  }
}

module attributes {stable_mosaic.version = 11 : i64} {
  func.func @discriminator_kernel(%arg0: i32, %arg1: memref<2x256xf32, #tpu.memory_space<vmem>>, %arg2: memref<256x1024xbf16, #tpu.memory_space<vmem>>, %arg3: memref<1x1024xf32, #tpu.memory_space<vmem>>, %arg4: memref<1024x128xbf16, #tpu.memory_space<vmem>>, %arg5: memref<1x128xf32, #tpu.memory_space<vmem>>, %arg6: memref<2x128xf32, #tpu.memory_space<vmem>>) attributes {dimension_semantics = [#tpu.dimension_semantics<parallel>], iteration_bounds = array<i64: 1>, scalar_prefetch = 0 : i64, scratch_operands = 0 : i64, tpu.core_type = #tpu.core_type<tc>, window_params = [{transform_indices = @transform_0, window_bounds = array<i64: 2, 256>}, {pipeline_mode = #tpu.pipeline_mode<synchronous>, transform_indices = @transform_1, window_bounds = array<i64: 256, 1024>}, {pipeline_mode = #tpu.pipeline_mode<synchronous>, transform_indices = @transform_2, window_bounds = array<i64: 1, 1024>}, {pipeline_mode = #tpu.pipeline_mode<synchronous>, transform_indices = @transform_3, window_bounds = array<i64: 1024, 128>}, {pipeline_mode = #tpu.pipeline_mode<synchronous>, transform_indices = @transform_4, window_bounds = array<i64: 1, 128>}, {transform_indices = @transform_5, window_bounds = array<i64: 2, 128>}]} {
    %c0 = arith.constant 0 : index
    %c0_0 = arith.constant 0 : index
    %0 = vector.load %arg1[%c0, %c0_0] : memref<2x256xf32, #tpu.memory_space<vmem>>, vector<2x256xf32>
    %1 = arith.truncf %0 : vector<2x256xf32> to vector<2x256xbf16>
    %c0_1 = arith.constant 0 : index
    %c0_2 = arith.constant 0 : index
    %2 = vector.load %arg2[%c0_1, %c0_2] : memref<256x1024xbf16, #tpu.memory_space<vmem>>, vector<256x1024xbf16>
    %cst = arith.constant dense<0.000000e+00> : vector<2x1024xf32>
    %3 = tpu.matmul %1, %2, %cst {dimension_numbers = #tpu.dot_dimension_numbers<[1], [0], [0], [1], [0, 0, 1, 1], [], []>} : vector<2x256xbf16>, vector<256x1024xbf16>, vector<2x1024xf32> -> vector<2x1024xf32>
    %c0_3 = arith.constant 0 : index
    %c0_4 = arith.constant 0 : index
    %4 = vector.load %arg3[%c0_3, %c0_4] : memref<1x1024xf32, #tpu.memory_space<vmem>>, vector<1x1024xf32>
    %5 = vector.broadcast %4 : vector<1x1024xf32> to vector<2x1024xf32>
    %6 = arith.addf %3, %5 : vector<2x1024xf32>
    %cst_5 = arith.constant 0.000000e+00 : f32
    %7 = vector.broadcast %cst_5 : f32 to vector<2x1024xf32>
    %8 = arith.maximumf %6, %7 : vector<2x1024xf32>
    %9 = arith.truncf %8 : vector<2x1024xf32> to vector<2x1024xbf16>
    %c0_6 = arith.constant 0 : index
    %c0_7 = arith.constant 0 : index
    %10 = vector.load %arg4[%c0_6, %c0_7] : memref<1024x128xbf16, #tpu.memory_space<vmem>>, vector<1024x128xbf16>
    %cst_8 = arith.constant dense<0.000000e+00> : vector<2x128xf32>
    %11 = tpu.matmul %9, %10, %cst_8 {dimension_numbers = #tpu.dot_dimension_numbers<[1], [0], [0], [1], [0, 0, 1, 1], [], []>} : vector<2x1024xbf16>, vector<1024x128xbf16>, vector<2x128xf32> -> vector<2x128xf32>
    %c0_9 = arith.constant 0 : index
    %c0_10 = arith.constant 0 : index
    %12 = vector.load %arg5[%c0_9, %c0_10] : memref<1x128xf32, #tpu.memory_space<vmem>>, vector<1x128xf32>
    %13 = vector.broadcast %12 : vector<1x128xf32> to vector<2x128xf32>
    %14 = arith.addf %11, %13 : vector<2x128xf32>
    %cst_11 = arith.constant dense<0xFF800000> : vector<2xf32>
    %15 = vector.multi_reduction <maximumf>, %14, %cst_11 [1] : vector<2x128xf32> to vector<2xf32>
    %16 = vector.shape_cast %15 : vector<2xf32> to vector<2x1xf32>
    %17 = vector.broadcast %16 : vector<2x1xf32> to vector<2x128xf32>
    %18 = arith.subf %14, %17 : vector<2x128xf32>
    %19 = math.exp %18 : vector<2x128xf32>
    %cst_12 = arith.constant dense<0.000000e+00> : vector<2xf32>
    %20 = vector.multi_reduction <add>, %19, %cst_12 [1] : vector<2x128xf32> to vector<2xf32>
    %21 = vector.shape_cast %20 : vector<2xf32> to vector<2x1xf32>
    %22 = tpu.reciprocal %21 {approx = true} : vector<2x1xf32> -> vector<2x1xf32>
    %23 = vector.broadcast %22 : vector<2x1xf32> to vector<2x128xf32>
    %24 = arith.mulf %19, %23 : vector<2x128xf32>
    %c0_13 = arith.constant 0 : index
    %c0_14 = arith.constant 0 : index
    %25 = vector.load %arg6[%c0_13, %c0_14] : memref<2x128xf32, #tpu.memory_space<vmem>>, vector<2x128xf32>
    tpu.vector_store %arg6[%c0_13, %c0_14], %24 {strides = array<i32>} : memref<2x128xf32, #tpu.memory_space<vmem>>, vector<2x128xf32>,
    return
  }
  func.func @transform_0(%arg0: i32) -> (i32, i32) {
    %c0_i32 = arith.constant 0 : i32
    %c0_i32_0 = arith.constant 0 : i32
    return %arg0, %c0_i32 : i32, i32
  }
  func.func @transform_1(%arg0: i32) -> (i32, i32) {
    %c0_i32 = arith.constant 0 : i32
    %c0_i32_0 = arith.constant 0 : i32
    %c0_i32_1 = arith.constant 0 : i32
    return %c0_i32, %c0_i32_0 : i32, i32
  }
  func.func @transform_2(%arg0: i32) -> (i32, i32) {
    %c0_i32 = arith.constant 0 : i32
    %c0_i32_0 = arith.constant 0 : i32
    %c0_i32_1 = arith.constant 0 : i32
    return %c0_i32, %c0_i32_0 : i32, i32
  }
  func.func @transform_3(%arg0: i32) -> (i32, i32) {
    %c0_i32 = arith.constant 0 : i32
    %c0_i32_0 = arith.constant 0 : i32
    %c0_i32_1 = arith.constant 0 : i32
    return %c0_i32, %c0_i32_0 : i32, i32
  }
  func.func @transform_4(%arg0: i32) -> (i32, i32) {
    %c0_i32 = arith.constant 0 : i32
    %c0_i32_0 = arith.constant 0 : i32
    %c0_i32_1 = arith.constant 0 : i32
    return %c0_i32, %c0_i32_0 : i32, i32
  }
  func.func @transform_5(%arg0: i32) -> (i32, i32) {
    %c0_i32 = arith.constant 0 : i32
    %c0_i32_0 = arith.constant 0 : i32
    return %arg0, %c0_i32 : i32, i32
  }
}

</mosaic_0001>

<llo_original>
// kernel: tpu_custom_call.1
$region0: #{tpu_custom_call.1}
  #allocation0 [shape = 'u32[]', space=smem, size = 0x4, offset = 0x4, fixed_abs, tag = 'smem constant byte address 0x4 - core index']
  #allocation1 [shape = 'u32[144,128]{1,0:T(1,128)}', space=vmem, size = 0x12000, scoped, tag = 'internal scratch']
  %s0 = inlined_call_operand.hbm [shape: f32[2,256], index: 0, kind: input, shape index: {}]
  %s1 = inlined_call_operand.hbm [shape: bf16[256,1024], index: 1, kind: input, shape index: {}]
  %s2 = inlined_call_operand.hbm [shape: f32[1,1024], index: 2, kind: input, shape index: {}]
  %s3 = inlined_call_operand.hbm [shape: bf16[1024,128], index: 3, kind: input, shape index: {}]
  %s4 = inlined_call_operand.vmem [shape: f32[1,128], index: 4, kind: input, shape index: {}]
  %s5 = inlined_call_operand.hbm [shape: f32[2,128], index: 5, kind: output, shape index: {}]
  %s6 = sld [smem:[#allocation0]]
  $region46: #{tpu_custom_call.1} parent=0
    _
  %s8 = ssub.s32 1, %s6
  %s9 = scalar_select 0, %s8, %s6
  $region1: #{tpu_custom_call.1} parent=0
    #allocation2 [shape = 'u8[2048]{0}', space=vmem, size = 0x800, scoped, tag = 'input window, operand 0, single buffered']
    #allocation3 [shape = 's32[1]{0}', space=sflag, size = 0x4, scoped, tag = 'scoped memory for tpu_custom_call.1']
    #allocation4 [shape = 's32[1]{0}', space=sflag, size = 0x4, scoped, tag = 'scoped memory for tpu_custom_call.1']
    #allocation5 [shape = 'u8[524288]{0}', space=vmem, size = 0x80000, scoped, tag = 'input window, operand 1, single buffered']
    #allocation6 [shape = 's32[1]{0}', space=sflag, size = 0x4, scoped, tag = 'scoped memory for tpu_custom_call.1']
    #allocation7 [shape = 'u8[4096]{0}', space=vmem, size = 0x1000, scoped, tag = 'input window, operand 2, single buffered']
    #allocation8 [shape = 'u8[262144]{0}', space=vmem, size = 0x40000, scoped, tag = 'input window, operand 3, single buffered']
    #allocation9 [shape = 's32[1]{0}', space=sflag, size = 0x4, scoped, tag = 'scoped memory for tpu_custom_call.1']
    #allocation10 [shape = 'u8[1024]{0}', space=vmem, size = 0x400, scoped, tag = 'output window, operand 0, single buffered']
    %10 = vsyncpa [#allocation3], 0
    %11 = vsyncpa [#allocation6], 0
    %12 = vsyncpa [#allocation9], 0
    %13 = vsyncpa [#allocation4], 0
    // Predicated region
    $region2: #{tpu_custom_call.1} parent=1 // pred_check
      _
    $region3: #{tpu_custom_call.1} parent=1 // pred_check_branch
      %15 = sbr.rel (0) target = $region5
    $region4: #{tpu_custom_call.1} parent=1 // pred_region
      %s17 = ssub.s32 64, 64
      %18 = vsyncadd [#allocation3], %s17
      %s20 = sshll.u32 [#allocation2], 4
      %s21 = int_to_ptr.vmem [resolvable:$true] %s20
      %23 = dma.hbm_to_vmem [thread:$0]  %s0, 64, %s21, [#allocation3]
    $region5: #{tpu_custom_call.1} parent=1 // pred_fallthru
      _
    // Predicated region
    $region6: #{tpu_custom_call.1} parent=1 // pred_check
      _
    $region7: #{tpu_custom_call.1} parent=1 // pred_check_branch
      %25 = sbr.rel (0) target = $region9
    $region8: #{tpu_custom_call.1} parent=1 // pred_region
      %s27 = ssub.s32 16384, 16384
      %28 = vsyncadd [#allocation6], %s27
      %s29 = sshll.u32 [#allocation5], 4
      %s30 = int_to_ptr.vmem [resolvable:$true] %s29
      %35 = dma.hbm_to_vmem [thread:$0]  %s1, 16384, %s30, [#allocation6], 512, 512, 32
    $region9: #{tpu_custom_call.1} parent=1 // pred_fallthru
      _
    // Predicated region
    $region10: #{tpu_custom_call.1} parent=1 // pred_check
      _
    $region11: #{tpu_custom_call.1} parent=1 // pred_check_branch
      %37 = sbr.rel (0) target = $region13
    $region12: #{tpu_custom_call.1} parent=1 // pred_region
      %s39 = ssub.s32 128, 128
      %40 = vsyncadd [#allocation6], %s39
      %s42 = sshll.u32 [#allocation7], 4
      %s43 = int_to_ptr.vmem [resolvable:$true] %s42
      %45 = dma.hbm_to_vmem [thread:$0]  %s2, 128, %s43, [#allocation6]
    $region13: #{tpu_custom_call.1} parent=1 // pred_fallthru
      _
    // Predicated region
    $region14: #{tpu_custom_call.1} parent=1 // pred_check
      _
    $region15: #{tpu_custom_call.1} parent=1 // pred_check_branch
      %47 = sbr.rel (0) target = $region17
    $region16: #{tpu_custom_call.1} parent=1 // pred_region
      %s49 = ssub.s32 8192, 8192
      %50 = vsyncadd [#allocation9], %s49
      %s51 = sshll.u32 [#allocation8], 4
      %s52 = int_to_ptr.vmem [resolvable:$true] %s51
      %57 = dma.hbm_to_vmem [thread:$0]  %s3, 8192, %s52, [#allocation9], 64, 64, 4
    $region17: #{tpu_custom_call.1} parent=1 // pred_fallthru
      _
    // Predicated region
    $region18: #{tpu_custom_call.1} parent=1 // pred_check
      _
    $region19: #{tpu_custom_call.1} parent=1 // pred_check_branch
      %59 = sbr.rel (0) target = $region21
    $region20: #{tpu_custom_call.1} parent=1 // pred_region
      _
    $region21: #{tpu_custom_call.1} parent=1 // pred_fallthru
      _
    // Predicated region
    $region22: #{tpu_custom_call.1} parent=1 // pred_check
      _
    $region23: #{tpu_custom_call.1} parent=1 // pred_check_branch
      %61 = sbr.rel (0) target = $region25
    $region24: #{tpu_custom_call.1} parent=1 // pred_region
      %62 = dma.done [#allocation3], 64
    $region25: #{tpu_custom_call.1} parent=1 // pred_fallthru
      _
    // Predicated region
    $region26: #{tpu_custom_call.1} parent=1 // pred_check
      _
    $region27: #{tpu_custom_call.1} parent=1 // pred_check_branch
      %64 = sbr.rel (0) target = $region29
    $region28: #{tpu_custom_call.1} parent=1 // pred_region
      %65 = dma.done [#allocation6], 16384
    $region29: #{tpu_custom_call.1} parent=1 // pred_fallthru
      _
    // Predicated region
    $region30: #{tpu_custom_call.1} parent=1 // pred_check
      _
    $region31: #{tpu_custom_call.1} parent=1 // pred_check_branch
      %67 = sbr.rel (0) target = $region33
    $region32: #{tpu_custom_call.1} parent=1 // pred_region
      %68 = dma.done [#allocation6], 128
    $region33: #{tpu_custom_call.1} parent=1 // pred_fallthru
      _
    // Predicated region
    $region34: #{tpu_custom_call.1} parent=1 // pred_check
      _
    $region35: #{tpu_custom_call.1} parent=1 // pred_check_branch
      %70 = sbr.rel (0) target = $region37
    $region36: #{tpu_custom_call.1} parent=1 // pred_region
      %71 = dma.done [#allocation9], 8192
    $region37: #{tpu_custom_call.1} parent=1 // pred_fallthru
      _
    %v73 = vld [vmem:[#allocation2] sm:$0xf]
    %v76 = vunpack.c.l.s4 1983009808
    %v77 = vunpack.c.0.s8 %v76
    %v78 = vlaneseq
    %v79 = vshrl.u32 %v78, 7
    %v80 = vsub.s32 %v77, %v79
    %v81 = vrot.slane %v73, %v80
    %v82 = vcombine.high %v81, %v81
    %v85 = vpack.c.bf16 %v81, %v81
    %v86 = vpack.c.bf16 %v82, %v82
    %v87 = vld [vmem:[#allocation5] sm:$0xff]
    %v88 = vld [vmem:[#allocation5 + $0x8] sm:$0xff]
    %v89 = vld [vmem:[#allocation5 + $0x10] sm:$0xff]
    %v90 = vld [vmem:[#allocation5 + $0x18] sm:$0xff]
    %v91 = vld [vmem:[#allocation5 + $0x20] sm:$0xff]
    %v92 = vld [vmem:[#allocation5 + $0x28] sm:$0xff]
    %v93 = vld [vmem:[#allocation5 + $0x30] sm:$0xff]
    %v94 = vld [vmem:[#allocation5 + $0x38] sm:$0xff]
    %v95 = vld [vmem:[#allocation5 + $0x40] sm:$0xff]
    %v96 = vld [vmem:[#allocation5 + $0x48] sm:$0xff]
    %v97 = vld [vmem:[#allocation5 + $0x50] sm:$0xff]
    %v98 = vld [vmem:[#allocation5 + $0x58] sm:$0xff]
    %v99 = vld [vmem:[#allocation5 + $0x60] sm:$0xff]
    %v100 = vld [vmem:[#allocation5 + $0x68] sm:$0xff]
    %v101 = vld [vmem:[#allocation5 + $0x70] sm:$0xff]
    %v102 = vld [vmem:[#allocation5 + $0x78] sm:$0xff]
    %v103 = vld [vmem:[#allocation5 + $0x80] sm:$0xff]
    %v104 = vld [vmem:[#allocation5 + $0x88] sm:$0xff]
    %v105 = vld [vmem:[#allocation5 + $0x90] sm:$0xff]
    %v106 = vld [vmem:[#allocation5 + $0x98] sm:$0xff]
    %v107 = vld [vmem:[#allocation5 + $0xa0] sm:$0xff]
    %v108 = vld [vmem:[#allocation5 + $0xa8] sm:$0xff]
    %v109 = vld [vmem:[#allocation5 + $0xb0] sm:$0xff]
    %v110 = vld [vmem:[#allocation5 + $0xb8] sm:$0xff]
    %v111 = vld [vmem:[#allocation5 + $0xc0] sm:$0xff]
    %v112 = vld [vmem:[#allocation5 + $0xc8] sm:$0xff]
    %v113 = vld [vmem:[#allocation5 + $0xd0] sm:$0xff]
    %v114 = vld [vmem:[#allocation5 + $0xd8] sm:$0xff]
    %v115 = vld [vmem:[#allocation5 + $0xe0] sm:$0xff]
    %v116 = vld [vmem:[#allocation5 + $0xe8] sm:$0xff]
    %v117 = vld [vmem:[#allocation5 + $0xf0] sm:$0xff]
    %v118 = vld [vmem:[#allocation5 + $0xf8] sm:$0xff]
    %v119 = vld [vmem:[#allocation5 + $0x100] sm:$0xff]
    %v120 = vld [vmem:[#allocation5 + $0x108] sm:$0xff]
    %v121 = vld [vmem:[#allocation5 + $0x110] sm:$0xff]
    %v122 = vld [vmem:[#allocation5 + $0x118] sm:$0xff]
    %v123 = vld [vmem:[#allocation5 + $0x120] sm:$0xff]
    %v124 = vld [vmem:[#allocation5 + $0x128] sm:$0xff]
    %v125 = vld [vmem:[#allocation5 + $0x130] sm:$0xff]
    %v126 = vld [vmem:[#allocation5 + $0x138] sm:$0xff]
    %v127 = vld [vmem:[#allocation5 + $0x140] sm:$0xff]
    %v128 = vld [vmem:[#allocation5 + $0x148] sm:$0xff]
    %v129 = vld [vmem:[#allocation5 + $0x150] sm:$0xff]
    %v130 = vld [vmem:[#allocation5 + $0x158] sm:$0xff]
    %v131 = vld [vmem:[#allocation5 + $0x160] sm:$0xff]
    %v132 = vld [vmem:[#allocation5 + $0x168] sm:$0xff]
    %v133 = vld [vmem:[#allocation5 + $0x170] sm:$0xff]
    %v134 = vld [vmem:[#allocation5 + $0x178] sm:$0xff]
    %v135 = vld [vmem:[#allocation5 + $0x180] sm:$0xff]
    %v136 = vld [vmem:[#allocation5 + $0x188] sm:$0xff]
    %v137 = vld [vmem:[#allocation5 + $0x190] sm:$0xff]
    %v138 = vld [vmem:[#allocation5 + $0x198] sm:$0xff]
    %v139 = vld [vmem:[#allocation5 + $0x1a0] sm:$0xff]
    %v140 = vld [vmem:[#allocation5 + $0x1a8] sm:$0xff]
    %v141 = vld [vmem:[#allocation5 + $0x1b0] sm:$0xff]
    %v142 = vld [vmem:[#allocation5 + $0x1b8] sm:$0xff]
    %v143 = vld [vmem:[#allocation5 + $0x1c0] sm:$0xff]
    %v144 = vld [vmem:[#allocation5 + $0x1c8] sm:$0xff]
    %v145 = vld [vmem:[#allocation5 + $0x1d0] sm:$0xff]
    %v146 = vld [vmem:[#allocation5 + $0x1d8] sm:$0xff]
    %v147 = vld [vmem:[#allocation5 + $0x1e0] sm:$0xff]
    %v148 = vld [vmem:[#allocation5 + $0x1e8] sm:$0xff]
    %v149 = vld [vmem:[#allocation5 + $0x1f0] sm:$0xff]
    %v150 = vld [vmem:[#allocation5 + $0x1f8] sm:$0xff]
    %v151 = vld [vmem:[#allocation5 + $0x200] sm:$0xff]
    %v152 = vld [vmem:[#allocation5 + $0x208] sm:$0xff]
    %v153 = vld [vmem:[#allocation5 + $0x210] sm:$0xff]
    %v154 = vld [vmem:[#allocation5 + $0x218] sm:$0xff]
    %v155 = vld [vmem:[#allocation5 + $0x220] sm:$0xff]
    %v156 = vld [vmem:[#allocation5 + $0x228] sm:$0xff]
    %v157 = vld [vmem:[#allocation5 + $0x230] sm:$0xff]
    %v158 = vld [vmem:[#allocation5 + $0x238] sm:$0xff]
    %v159 = vld [vmem:[#allocation5 + $0x240] sm:$0xff]
    %v160 = vld [vmem:[#allocation5 + $0x248] sm:$0xff]
    %v161 = vld [vmem:[#allocation5 + $0x250] sm:$0xff]
    %v162 = vld [vmem:[#allocation5 + $0x258] sm:$0xff]
    %v163 = vld [vmem:[#allocation5 + $0x260] sm:$0xff]
    %v164 = vld [vmem:[#allocation5 + $0x268] sm:$0xff]
    %v165 = vld [vmem:[#allocation5 + $0x270] sm:$0xff]
    %v166 = vld [vmem:[#allocation5 + $0x278] sm:$0xff]
    %v167 = vld [vmem:[#allocation5 + $0x280] sm:$0xff]
    %v168 = vld [vmem:[#allocation5 + $0x288] sm:$0xff]
    %v169 = vld [vmem:[#allocation5 + $0x290] sm:$0xff]
    %v170 = vld [vmem:[#allocation5 + $0x298] sm:$0xff]
    %v171 = vld [vmem:[#allocation5 + $0x2a0] sm:$0xff]
    %v172 = vld [vmem:[#allocation5 + $0x2a8] sm:$0xff]
    %v173 = vld [vmem:[#allocation5 + $0x2b0] sm:$0xff]
    %v174 = vld [vmem:[#allocation5 + $0x2b8] sm:$0xff]
    %v175 = vld [vmem:[#allocation5 + $0x2c0] sm:$0xff]
    %v176 = vld [vmem:[#allocation5 + $0x2c8] sm:$0xff]
    %v177 = vld [vmem:[#allocation5 + $0x2d0] sm:$0xff]
    %v178 = vld [vmem:[#allocation5 + $0x2d8] sm:$0xff]
    %v179 = vld [vmem:[#allocation5 + $0x2e0] sm:$0xff]
    %v180 = vld [vmem:[#allocation5 + $0x2e8] sm:$0xff]
    %v181 = vld [vmem:[#allocation5 + $0x2f0] sm:$0xff]
    %v182 = vld [vmem:[#allocation5 + $0x2f8] sm:$0xff]
    %v183 = vld [vmem:[#allocation5 + $0x300] sm:$0xff]
    %v184 = vld [vmem:[#allocation5 + $0x308] sm:$0xff]
    %v185 = vld [vmem:[#allocation5 + $0x310] sm:$0xff]
    %v186 = vld [vmem:[#allocation5 + $0x318] sm:$0xff]
    %v187 = vld [vmem:[#allocation5 + $0x320] sm:$0xff]
    %v188 = vld [vmem:[#allocation5 + $0x328] sm:$0xff]
    %v189 = vld [vmem:[#allocation5 + $0x330] sm:$0xff]
    %v190 = vld [vmem:[#allocation5 + $0x338] sm:$0xff]
    %v191 = vld [vmem:[#allocation5 + $0x340] sm:$0xff]
    %v192 = vld [vmem:[#allocation5 + $0x348] sm:$0xff]
    %v193 = vld [vmem:[#allocation5 + $0x350] sm:$0xff]
    %v194 = vld [vmem:[#allocation5 + $0x358] sm:$0xff]
    %v195 = vld [vmem:[#allocation5 + $0x360] sm:$0xff]
    %v196 = vld [vmem:[#allocation5 + $0x368] sm:$0xff]
    %v197 = vld [vmem:[#allocation5 + $0x370] sm:$0xff]
    %v198 = vld [vmem:[#allocation5 + $0x378] sm:$0xff]
    %v199 = vld [vmem:[#allocation5 + $0x380] sm:$0xff]
    %v200 = vld [vmem:[#allocation5 + $0x388] sm:$0xff]
    %v201 = vld [vmem:[#allocation5 + $0x390] sm:$0xff]
    %v202 = vld [vmem:[#allocation5 + $0x398] sm:$0xff]
    %v203 = vld [vmem:[#allocation5 + $0x3a0] sm:$0xff]
    %v204 = vld [vmem:[#allocation5 + $0x3a8] sm:$0xff]
    %v205 = vld [vmem:[#allocation5 + $0x3b0] sm:$0xff]
    %v206 = vld [vmem:[#allocation5 + $0x3b8] sm:$0xff]
    %v207 = vld [vmem:[#allocation5 + $0x3c0] sm:$0xff]
    %v208 = vld [vmem:[#allocation5 + $0x3c8] sm:$0xff]
    %v209 = vld [vmem:[#allocation5 + $0x3d0] sm:$0xff]
    %v210 = vld [vmem:[#allocation5 + $0x3d8] sm:$0xff]
    %v211 = vld [vmem:[#allocation5 + $0x3e0] sm:$0xff]
    %v212 = vld [vmem:[#allocation5 + $0x3e8] sm:$0xff]
    %v213 = vld [vmem:[#allocation5 + $0x3f0] sm:$0xff]
    %v214 = vld [vmem:[#allocation5 + $0x3f8] sm:$0xff]
    %v215 = vld [vmem:[#allocation7] sm:$0xff]
    %v217 = vlaneseq
    %v218 = vshrl.u32 %v217, 7
    %v219 = vsub.s32 0, %v218
    %v220 = vrot.slane %v215, %v219
    %v221 = vlaneseq
    %v222 = vshrl.u32 %v221, 7
    %v223 = vsub.s32 1, %v222
    %v224 = vrot.slane %v215, %v223
    %v225 = vlaneseq
    %v226 = vshrl.u32 %v225, 7
    %v227 = vsub.s32 2, %v226
    %v228 = vrot.slane %v215, %v227
    %v229 = vlaneseq
    %v230 = vshrl.u32 %v229, 7
    %v231 = vsub.s32 3, %v230
    %v232 = vrot.slane %v215, %v231
    %v233 = vlaneseq
    %v234 = vshrl.u32 %v233, 7
    %v235 = vsub.s32 4, %v234
    %v236 = vrot.slane %v215, %v235
    %v237 = vlaneseq
    %v238 = vshrl.u32 %v237, 7
    %v239 = vsub.s32 5, %v238
    %v240 = vrot.slane %v215, %v239
    %v241 = vlaneseq
    %v242 = vshrl.u32 %v241, 7
    %v243 = vsub.s32 6, %v242
    %v244 = vrot.slane %v215, %v243
    %v245 = vlaneseq
    %v246 = vshrl.u32 %v245, 7
    %v247 = vsub.s32 7, %v246
    %v248 = vrot.slane %v215, %v247
    %v385 = vunpack.c.l.b16 %v87
    %v386 = vunpack.c.h.b16 %v87
    %v387 = vunpack.c.l.b16 %v88
    %v388 = vunpack.c.h.b16 %v88
    %v389 = vunpack.c.l.b16 %v89
    %v390 = vunpack.c.h.b16 %v89
    %v391 = vunpack.c.l.b16 %v90
    %v392 = vunpack.c.h.b16 %v90
    %v393 = vunpack.c.l.b16 %v91
    %v394 = vunpack.c.h.b16 %v91
    %v395 = vunpack.c.l.b16 %v92
    %v396 = vunpack.c.h.b16 %v92
    %v397 = vunpack.c.l.b16 %v93
    %v398 = vunpack.c.h.b16 %v93
    %v399 = vunpack.c.l.b16 %v94
    %v400 = vunpack.c.h.b16 %v94
    %v401 = vunpack.c.l.b16 %v95
    %v402 = vunpack.c.h.b16 %v95
    %v403 = vunpack.c.l.b16 %v96
    %v404 = vunpack.c.h.b16 %v96
    %v405 = vunpack.c.l.b16 %v97
    %v406 = vunpack.c.h.b16 %v97
    %v407 = vunpack.c.l.b16 %v98
    %v408 = vunpack.c.h.b16 %v98
    %v409 = vunpack.c.l.b16 %v99
    %v410 = vunpack.c.h.b16 %v99
    %v411 = vunpack.c.l.b16 %v100
    %v412 = vunpack.c.h.b16 %v100
    %v413 = vunpack.c.l.b16 %v101
    %v414 = vunpack.c.h.b16 %v101
    %v415 = vunpack.c.l.b16 %v102
    %v416 = vunpack.c.h.b16 %v102
    %v417 = vunpack.c.l.b16 %v103
    %v418 = vunpack.c.h.b16 %v103
    %v419 = vunpack.c.l.b16 %v104
    %v420 = vunpack.c.h.b16 %v104
    %v421 = vunpack.c.l.b16 %v105
    %v422 = vunpack.c.h.b16 %v105
    %v423 = vunpack.c.l.b16 %v106
    %v424 = vunpack.c.h.b16 %v106
    %v425 = vunpack.c.l.b16 %v107
    %v426 = vunpack.c.h.b16 %v107
    %v427 = vunpack.c.l.b16 %v108
    %v428 = vunpack.c.h.b16 %v108
    %v429 = vunpack.c.l.b16 %v109
    %v430 = vunpack.c.h.b16 %v109
    %v431 = vunpack.c.l.b16 %v110
    %v432 = vunpack.c.h.b16 %v110
    %v433 = vunpack.c.l.b16 %v111
    %v434 = vunpack.c.h.b16 %v111
    %v435 = vunpack.c.l.b16 %v112
    %v436 = vunpack.c.h.b16 %v112
    %v437 = vunpack.c.l.b16 %v113
    %v438 = vunpack.c.h.b16 %v113
    %v439 = vunpack.c.l.b16 %v114
    %v440 = vunpack.c.h.b16 %v114
    %v441 = vunpack.c.l.b16 %v115
    %v442 = vunpack.c.h.b16 %v115
    %v443 = vunpack.c.l.b16 %v116
    %v444 = vunpack.c.h.b16 %v116
    %v445 = vunpack.c.l.b16 %v117
    %v446 = vunpack.c.h.b16 %v117
    %v447 = vunpack.c.l.b16 %v118
    %v448 = vunpack.c.h.b16 %v118
    %v449 = vunpack.c.l.b16 %v119
    %v450 = vunpack.c.h.b16 %v119
    %v451 = vunpack.c.l.b16 %v120
    %v452 = vunpack.c.h.b16 %v120
    %v453 = vunpack.c.l.b16 %v121
    %v454 = vunpack.c.h.b16 %v121
    %v455 = vunpack.c.l.b16 %v122
    %v456 = vunpack.c.h.b16 %v122
    %v457 = vunpack.c.l.b16 %v123
    %v458 = vunpack.c.h.b16 %v123
    %v459 = vunpack.c.l.b16 %v124
    %v460 = vunpack.c.h.b16 %v124
    %v461 = vunpack.c.l.b16 %v125
    %v462 = vunpack.c.h.b16 %v125
    %v463 = vunpack.c.l.b16 %v126
    %v464 = vunpack.c.h.b16 %v126
    %v465 = vunpack.c.l.b16 %v127
    %v466 = vunpack.c.h.b16 %v127
    %v467 = vunpack.c.l.b16 %v128
    %v468 = vunpack.c.h.b16 %v128
    %v469 = vunpack.c.l.b16 %v129
    %v470 = vunpack.c.h.b16 %v129
    %v471 = vunpack.c.l.b16 %v130
    %v472 = vunpack.c.h.b16 %v130
    %v473 = vunpack.c.l.b16 %v131
    %v474 = vunpack.c.h.b16 %v131
    %v475 = vunpack.c.l.b16 %v132
    %v476 = vunpack.c.h.b16 %v132
    %v477 = vunpack.c.l.b16 %v133
    %v478 = vunpack.c.h.b16 %v133
    %v479 = vunpack.c.l.b16 %v134
    %v480 = vunpack.c.h.b16 %v134
    %v481 = vunpack.c.l.b16 %v135
    %v482 = vunpack.c.h.b16 %v135
    %v483 = vunpack.c.l.b16 %v136
    %v484 = vunpack.c.h.b16 %v136
    %v485 = vunpack.c.l.b16 %v137
    %v486 = vunpack.c.h.b16 %v137
    %v487 = vunpack.c.l.b16 %v138
    %v488 = vunpack.c.h.b16 %v138
    %v489 = vunpack.c.l.b16 %v139
    %v490 = vunpack.c.h.b16 %v139
    %v491 = vunpack.c.l.b16 %v140
    %v492 = vunpack.c.h.b16 %v140
    %v493 = vunpack.c.l.b16 %v141
    %v494 = vunpack.c.h.b16 %v141
    %v495 = vunpack.c.l.b16 %v142
    %v496 = vunpack.c.h.b16 %v142
    %v497 = vunpack.c.l.b16 %v143
    %v498 = vunpack.c.h.b16 %v143
    %v499 = vunpack.c.l.b16 %v144
    %v500 = vunpack.c.h.b16 %v144
    %v501 = vunpack.c.l.b16 %v145
    %v502 = vunpack.c.h.b16 %v145
    %v503 = vunpack.c.l.b16 %v146
    %v504 = vunpack.c.h.b16 %v146
    %v505 = vunpack.c.l.b16 %v147
    %v506 = vunpack.c.h.b16 %v147
    %v507 = vunpack.c.l.b16 %v148
    %v508 = vunpack.c.h.b16 %v148
    %v509 = vunpack.c.l.b16 %v149
    %v510 = vunpack.c.h.b16 %v149
    %v511 = vunpack.c.l.b16 %v150
    %v512 = vunpack.c.h.b16 %v150
    %v513 = vunpack.c.l.b16 %v151
    %v514 = vunpack.c.h.b16 %v151
    %v515 = vunpack.c.l.b16 %v152
    %v516 = vunpack.c.h.b16 %v152
    %v517 = vunpack.c.l.b16 %v153
    %v518 = vunpack.c.h.b16 %v153
    %v519 = vunpack.c.l.b16 %v154
    %v520 = vunpack.c.h.b16 %v154
    %v521 = vunpack.c.l.b16 %v155
    %v522 = vunpack.c.h.b16 %v155
    %v523 = vunpack.c.l.b16 %v156
    %v524 = vunpack.c.h.b16 %v156
    %v525 = vunpack.c.l.b16 %v157
    %v526 = vunpack.c.h.b16 %v157
    %v527 = vunpack.c.l.b16 %v158
    %v528 = vunpack.c.h.b16 %v158
    %v529 = vunpack.c.l.b16 %v159
    %v530 = vunpack.c.h.b16 %v159
    %v531 = vunpack.c.l.b16 %v160
    %v532 = vunpack.c.h.b16 %v160
    %v533 = vunpack.c.l.b16 %v161
    %v534 = vunpack.c.h.b16 %v161
    %v535 = vunpack.c.l.b16 %v162
    %v536 = vunpack.c.h.b16 %v162
    %v537 = vunpack.c.l.b16 %v163
    %v538 = vunpack.c.h.b16 %v163
    %v539 = vunpack.c.l.b16 %v164
    %v540 = vunpack.c.h.b16 %v164
    %v541 = vunpack.c.l.b16 %v165
    %v542 = vunpack.c.h.b16 %v165
    %v543 = vunpack.c.l.b16 %v166
    %v544 = vunpack.c.h.b16 %v166
    %v545 = vunpack.c.l.b16 %v167
    %v546 = vunpack.c.h.b16 %v167
    %v547 = vunpack.c.l.b16 %v168
    %v548 = vunpack.c.h.b16 %v168
    %v549 = vunpack.c.l.b16 %v169
    %v550 = vunpack.c.h.b16 %v169
    %v551 = vunpack.c.l.b16 %v170
    %v552 = vunpack.c.h.b16 %v170
    %v553 = vunpack.c.l.b16 %v171
    %v554 = vunpack.c.h.b16 %v171
    %v555 = vunpack.c.l.b16 %v172
    %v556 = vunpack.c.h.b16 %v172
    %v557 = vunpack.c.l.b16 %v173
    %v558 = vunpack.c.h.b16 %v173
    %v559 = vunpack.c.l.b16 %v174
    %v560 = vunpack.c.h.b16 %v174
    %v561 = vunpack.c.l.b16 %v175
    %v562 = vunpack.c.h.b16 %v175
    %v563 = vunpack.c.l.b16 %v176
    %v564 = vunpack.c.h.b16 %v176
    %v565 = vunpack.c.l.b16 %v177
    %v566 = vunpack.c.h.b16 %v177
    %v567 = vunpack.c.l.b16 %v178
    %v568 = vunpack.c.h.b16 %v178
    %v569 = vunpack.c.l.b16 %v179
    %v570 = vunpack.c.h.b16 %v179
    %v571 = vunpack.c.l.b16 %v180
    %v572 = vunpack.c.h.b16 %v180
    %v573 = vunpack.c.l.b16 %v181
    %v574 = vunpack.c.h.b16 %v181
    %v575 = vunpack.c.l.b16 %v182
    %v576 = vunpack.c.h.b16 %v182
    %v577 = vunpack.c.l.b16 %v183
    %v578 = vunpack.c.h.b16 %v183
    %v579 = vunpack.c.l.b16 %v184
    %v580 = vunpack.c.h.b16 %v184
    %v581 = vunpack.c.l.b16 %v185
    %v582 = vunpack.c.h.b16 %v185
    %v583 = vunpack.c.l.b16 %v186
    %v584 = vunpack.c.h.b16 %v186
    %v585 = vunpack.c.l.b16 %v187
    %v586 = vunpack.c.h.b16 %v187
    %v587 = vunpack.c.l.b16 %v188
    %v588 = vunpack.c.h.b16 %v188
    %v589 = vunpack.c.l.b16 %v189
    %v590 = vunpack.c.h.b16 %v189
    %v591 = vunpack.c.l.b16 %v190
    %v592 = vunpack.c.h.b16 %v190
    %v593 = vunpack.c.l.b16 %v191
    %v594 = vunpack.c.h.b16 %v191
    %v595 = vunpack.c.l.b16 %v192
    %v596 = vunpack.c.h.b16 %v192
    %v597 = vunpack.c.l.b16 %v193
    %v598 = vunpack.c.h.b16 %v193
    %v599 = vunpack.c.l.b16 %v194
    %v600 = vunpack.c.h.b16 %v194
    %v601 = vunpack.c.l.b16 %v195
    %v602 = vunpack.c.h.b16 %v195
    %v603 = vunpack.c.l.b16 %v196
    %v604 = vunpack.c.h.b16 %v196
    %v605 = vunpack.c.l.b16 %v197
    %v606 = vunpack.c.h.b16 %v197
    %v607 = vunpack.c.l.b16 %v198
    %v608 = vunpack.c.h.b16 %v198
    %v609 = vunpack.c.l.b16 %v199
    %v610 = vunpack.c.h.b16 %v199
    %v611 = vunpack.c.l.b16 %v200
    %v612 = vunpack.c.h.b16 %v200
    %v613 = vunpack.c.l.b16 %v201
    %v614 = vunpack.c.h.b16 %v201
    %v615 = vunpack.c.l.b16 %v202
    %v616 = vunpack.c.h.b16 %v202
    %v617 = vunpack.c.l.b16 %v203
    %v618 = vunpack.c.h.b16 %v203
    %v619 = vunpack.c.l.b16 %v204
    %v620 = vunpack.c.h.b16 %v204
    %v621 = vunpack.c.l.b16 %v205
    %v622 = vunpack.c.h.b16 %v205
    %v623 = vunpack.c.l.b16 %v206
    %v624 = vunpack.c.h.b16 %v206
    %v625 = vunpack.c.l.b16 %v207
    %v626 = vunpack.c.h.b16 %v207
    %v627 = vunpack.c.l.b16 %v208
    %v628 = vunpack.c.h.b16 %v208
    %v629 = vunpack.c.l.b16 %v209
    %v630 = vunpack.c.h.b16 %v209
    %v631 = vunpack.c.l.b16 %v210
    %v632 = vunpack.c.h.b16 %v210
    %v633 = vunpack.c.l.b16 %v211
    %v634 = vunpack.c.h.b16 %v211
    %v635 = vunpack.c.l.b16 %v212
    %v636 = vunpack.c.h.b16 %v212
    %v637 = vunpack.c.l.b16 %v213
    %v638 = vunpack.c.h.b16 %v213
    %v639 = vunpack.c.l.b16 %v214
    %v640 = vunpack.c.h.b16 %v214
    %v641 = vpack.c.b16 %v393, %v385
    %v642 = vpack.c.b16 %v394, %v386
    %v643 = vpack.c.b16 %v395, %v387
    %v644 = vpack.c.b16 %v396, %v388
    %v645 = vpack.c.b16 %v397, %v389
    %v646 = vpack.c.b16 %v398, %v390
    %v647 = vpack.c.b16 %v399, %v391
    %v648 = vpack.c.b16 %v400, %v392
    %v649 = vpack.c.b16 %v409, %v401
    %v650 = vpack.c.b16 %v410, %v402
    %v651 = vpack.c.b16 %v411, %v403
    %v652 = vpack.c.b16 %v412, %v404
    %v653 = vpack.c.b16 %v413, %v405
    %v654 = vpack.c.b16 %v414, %v406
    %v655 = vpack.c.b16 %v415, %v407
    %v656 = vpack.c.b16 %v416, %v408
    %v657 = vpack.c.b16 %v425, %v417
    %v658 = vpack.c.b16 %v426, %v418
    %v659 = vpack.c.b16 %v427, %v419
    %v660 = vpack.c.b16 %v428, %v420
    %v661 = vpack.c.b16 %v429, %v421
    %v662 = vpack.c.b16 %v430, %v422
    %v663 = vpack.c.b16 %v431, %v423
    %v664 = vpack.c.b16 %v432, %v424
    %v665 = vpack.c.b16 %v441, %v433
    %v666 = vpack.c.b16 %v442, %v434
    %v667 = vpack.c.b16 %v443, %v435
    %v668 = vpack.c.b16 %v444, %v436
    %v669 = vpack.c.b16 %v445, %v437
    %v670 = vpack.c.b16 %v446, %v438
    %v671 = vpack.c.b16 %v447, %v439
    %v672 = vpack.c.b16 %v448, %v440
    %v673 = vpack.c.b16 %v457, %v449
    %v674 = vpack.c.b16 %v458, %v450
    %v675 = vpack.c.b16 %v459, %v451
    %v676 = vpack.c.b16 %v460, %v452
    %v677 = vpack.c.b16 %v461, %v453
    %v678 = vpack.c.b16 %v462, %v454
    %v679 = vpack.c.b16 %v463, %v455
    %v680 = vpack.c.b16 %v464, %v456
    %v681 = vpack.c.b16 %v473, %v465
    %v682 = vpack.c.b16 %v474, %v466
    %v683 = vpack.c.b16 %v475, %v467
    %v684 = vpack.c.b16 %v476, %v468
    %v685 = vpack.c.b16 %v477, %v469
    %v686 = vpack.c.b16 %v478, %v470
    %v687 = vpack.c.b16 %v479, %v471
    %v688 = vpack.c.b16 %v480, %v472
    %v689 = vpack.c.b16 %v489, %v481
    %v690 = vpack.c.b16 %v490, %v482
    %v691 = vpack.c.b16 %v491, %v483
    %v692 = vpack.c.b16 %v492, %v484
    %v693 = vpack.c.b16 %v493, %v485
    %v694 = vpack.c.b16 %v494, %v486
    %v695 = vpack.c.b16 %v495, %v487
    %v696 = vpack.c.b16 %v496, %v488
    %v697 = vpack.c.b16 %v505, %v497
    %v698 = vpack.c.b16 %v506, %v498
    %v699 = vpack.c.b16 %v507, %v499
    %v700 = vpack.c.b16 %v508, %v500
    %v701 = vpack.c.b16 %v509, %v501
    %v702 = vpack.c.b16 %v510, %v502
    %v703 = vpack.c.b16 %v511, %v503
    %v704 = vpack.c.b16 %v512, %v504
    %v705 = vpack.c.b16 %v521, %v513
    %v706 = vpack.c.b16 %v522, %v514
    %v707 = vpack.c.b16 %v523, %v515
    %v708 = vpack.c.b16 %v524, %v516
    %v709 = vpack.c.b16 %v525, %v517
    %v710 = vpack.c.b16 %v526, %v518
    %v711 = vpack.c.b16 %v527, %v519
    %v712 = vpack.c.b16 %v528, %v520
    %v713 = vpack.c.b16 %v537, %v529
    %v714 = vpack.c.b16 %v538, %v530
    %v715 = vpack.c.b16 %v539, %v531
    %v716 = vpack.c.b16 %v540, %v532
    %v717 = vpack.c.b16 %v541, %v533
    %v718 = vpack.c.b16 %v542, %v534
    %v719 = vpack.c.b16 %v543, %v535
    %v720 = vpack.c.b16 %v544, %v536
    %v721 = vpack.c.b16 %v553, %v545
    %v722 = vpack.c.b16 %v554, %v546
    %v723 = vpack.c.b16 %v555, %v547
    %v724 = vpack.c.b16 %v556, %v548
    %v725 = vpack.c.b16 %v557, %v549
    %v726 = vpack.c.b16 %v558, %v550
    %v727 = vpack.c.b16 %v559, %v551
    %v728 = vpack.c.b16 %v560, %v552
    %v729 = vpack.c.b16 %v569, %v561
    %v730 = vpack.c.b16 %v570, %v562
    %v731 = vpack.c.b16 %v571, %v563
    %v732 = vpack.c.b16 %v572, %v564
    %v733 = vpack.c.b16 %v573, %v565
    %v734 = vpack.c.b16 %v574, %v566
    %v735 = vpack.c.b16 %v575, %v567
    %v736 = vpack.c.b16 %v576, %v568
    %v737 = vpack.c.b16 %v585, %v577
    %v738 = vpack.c.b16 %v586, %v578
    %v739 = vpack.c.b16 %v587, %v579
    %v740 = vpack.c.b16 %v588, %v580
    %v741 = vpack.c.b16 %v589, %v581
    %v742 = vpack.c.b16 %v590, %v582
    %v743 = vpack.c.b16 %v591, %v583
    %v744 = vpack.c.b16 %v592, %v584
    %v745 = vpack.c.b16 %v601, %v593
    %v746 = vpack.c.b16 %v602, %v594
    %v747 = vpack.c.b16 %v603, %v595
    %v748 = vpack.c.b16 %v604, %v596
    %v749 = vpack.c.b16 %v605, %v597
    %v750 = vpack.c.b16 %v606, %v598
    %v751 = vpack.c.b16 %v607, %v599
    %v752 = vpack.c.b16 %v608, %v600
    %v753 = vpack.c.b16 %v617, %v609
    %v754 = vpack.c.b16 %v618, %v610
    %v755 = vpack.c.b16 %v619, %v611
    %v756 = vpack.c.b16 %v620, %v612
    %v757 = vpack.c.b16 %v621, %v613
    %v758 = vpack.c.b16 %v622, %v614
    %v759 = vpack.c.b16 %v623, %v615
    %v760 = vpack.c.b16 %v624, %v616
    %v761 = vpack.c.b16 %v633, %v625
    %v762 = vpack.c.b16 %v634, %v626
    %v763 = vpack.c.b16 %v635, %v627
    %v764 = vpack.c.b16 %v636, %v628
    %v765 = vpack.c.b16 %v637, %v629
    %v766 = vpack.c.b16 %v638, %v630
    %v767 = vpack.c.b16 %v639, %v631
    %v768 = vpack.c.b16 %v640, %v632
    %897 = vmatprep.subr.bf16.mxu0 %v642
    %898 = vmatpush1.bf16.msra.mxu0 %v641
    %899 = vmatprep.subr.bf16.mxu0 %v650
    %900 = vmatpush1.bf16.msra.mxu0 %v649
    %901 = vmatprep.subr.bf16.mxu0 %v658
    %902 = vmatpush1.bf16.msra.mxu0 %v657
    %903 = vmatprep.subr.bf16.mxu0 %v666
    %904 = vmatpush1.bf16.msra.mxu0 %v665
    %905 = vmatprep.subr.bf16.mxu0 %v674
    %906 = vmatpush1.bf16.msra.mxu0 %v673
    %907 = vmatprep.subr.bf16.mxu0 %v682
    %908 = vmatpush1.bf16.msra.mxu0 %v681
    %909 = vmatprep.subr.bf16.mxu0 %v690
    %910 = vmatpush1.bf16.msra.mxu0 %v689
    %911 = vmatprep.subr.bf16.mxu0 %v698
    %912 = vmatpush1.bf16.msra.mxu0 %v697
    %913 = vmatprep.subr.bf16.mxu0 %v706
    %914 = vmatpush1.bf16.msra.mxu0 %v705
    %915 = vmatprep.subr.bf16.mxu0 %v714
    %916 = vmatpush1.bf16.msra.mxu0 %v713
    %917 = vmatprep.subr.bf16.mxu0 %v722
    %918 = vmatpush1.bf16.msra.mxu0 %v721
    %919 = vmatprep.subr.bf16.mxu0 %v730
    %920 = vmatpush1.bf16.msra.mxu0 %v729
    %921 = vmatprep.subr.bf16.mxu0 %v738
    %922 = vmatpush1.bf16.msra.mxu0 %v737
    %923 = vmatprep.subr.bf16.mxu0 %v746
    %924 = vmatpush1.bf16.msra.mxu0 %v745
    %925 = vmatprep.subr.bf16.mxu0 %v754
    %926 = vmatpush1.bf16.msra.mxu0 %v753
    %927 = vmatprep.subr.bf16.mxu0 %v762
    %928 = vmatpush1.bf16.msra.mxu0 %v761
    %929 = vmatprep.mubr.bf16.mxu0 %v86
    %930 = vmatmul.mubr.bf16.gmra.mrb[0].mxu0 %v85
    %v931 = vpop.f32.mrb[0].mxu0
    %v932 = vadd.f32 %v220, %v931
    %v933 = vpop.f32.mrb[0].mxu0
    %v934 = vadd.f32 %v224, %v933
    %v935 = vpop.f32.mrb[0].mxu0
    %v936 = vpop.f32.mrb[0].mxu0
    %937 = vdwg.mxu0
    %938 = vmatprep.subr.bf16.mxu0 %v644
    %939 = vmatpush1.bf16.msra.mxu0 %v643
    %940 = vmatprep.subr.bf16.mxu0 %v652
    %941 = vmatpush1.bf16.msra.mxu0 %v651
    %942 = vmatprep.subr.bf16.mxu0 %v660
    %943 = vmatpush1.bf16.msra.mxu0 %v659
    %944 = vmatprep.subr.bf16.mxu0 %v668
    %945 = vmatpush1.bf16.msra.mxu0 %v667
    %946 = vmatprep.subr.bf16.mxu0 %v676
    %947 = vmatpush1.bf16.msra.mxu0 %v675
    %948 = vmatprep.subr.bf16.mxu0 %v684
    %949 = vmatpush1.bf16.msra.mxu0 %v683
    %950 = vmatprep.subr.bf16.mxu0 %v692
    %951 = vmatpush1.bf16.msra.mxu0 %v691
    %952 = vmatprep.subr.bf16.mxu0 %v700
    %953 = vmatpush1.bf16.msra.mxu0 %v699
    %954 = vmatprep.subr.bf16.mxu0 %v708
    %955 = vmatpush1.bf16.msra.mxu0 %v707
    %956 = vmatprep.subr.bf16.mxu0 %v716
    %957 = vmatpush1.bf16.msra.mxu0 %v715
    %958 = vmatprep.subr.bf16.mxu0 %v724
    %959 = vmatpush1.bf16.msra.mxu0 %v723
    %960 = vmatprep.subr.bf16.mxu0 %v732
    %961 = vmatpush1.bf16.msra.mxu0 %v731
    %962 = vmatprep.subr.bf16.mxu0 %v740
    %963 = vmatpush1.bf16.msra.mxu0 %v739
    %964 = vmatprep.subr.bf16.mxu0 %v748
    %965 = vmatpush1.bf16.msra.mxu0 %v747
    %966 = vmatprep.subr.bf16.mxu0 %v756
    %967 = vmatpush1.bf16.msra.mxu0 %v755
    %968 = vmatprep.subr.bf16.mxu0 %v764
    %969 = vmatpush1.bf16.msra.mxu0 %v763
    %970 = vmatprep.mubr.bf16.mxu0 %v86
    %971 = vmatmul.mubr.bf16.gmra.mrb[0].mxu0 %v85
    %v972 = vpop.f32.mrb[0].mxu0
    %v973 = vadd.f32 %v228, %v972
    %v974 = vpop.f32.mrb[0].mxu0
    %v975 = vadd.f32 %v232, %v974
    %v976 = vpop.f32.mrb[0].mxu0
    %v977 = vpop.f32.mrb[0].mxu0
    %978 = vdwg.mxu0
    %979 = vmatprep.subr.bf16.mxu0 %v646
    %980 = vmatpush1.bf16.msra.mxu0 %v645
    %981 = vmatprep.subr.bf16.mxu0 %v654
    %982 = vmatpush1.bf16.msra.mxu0 %v653
    %983 = vmatprep.subr.bf16.mxu0 %v662
    %984 = vmatpush1.bf16.msra.mxu0 %v661
    %985 = vmatprep.subr.bf16.mxu0 %v670
    %986 = vmatpush1.bf16.msra.mxu0 %v669
    %987 = vmatprep.subr.bf16.mxu0 %v678
    %988 = vmatpush1.bf16.msra.mxu0 %v677
    %989 = vmatprep.subr.bf16.mxu0 %v686
    %990 = vmatpush1.bf16.msra.mxu0 %v685
    %991 = vmatprep.subr.bf16.mxu0 %v694
    %992 = vmatpush1.bf16.msra.mxu0 %v693
    %993 = vmatprep.subr.bf16.mxu0 %v702
    %994 = vmatpush1.bf16.msra.mxu0 %v701
    %995 = vmatprep.subr.bf16.mxu0 %v710
    %996 = vmatpush1.bf16.msra.mxu0 %v709
    %997 = vmatprep.subr.bf16.mxu0 %v718
    %998 = vmatpush1.bf16.msra.mxu0 %v717
    %999 = vmatprep.subr.bf16.mxu0 %v726
    %1000 = vmatpush1.bf16.msra.mxu0 %v725
    %1001 = vmatprep.subr.bf16.mxu0 %v734
    %1002 = vmatpush1.bf16.msra.mxu0 %v733
    %1003 = vmatprep.subr.bf16.mxu0 %v742
    %1004 = vmatpush1.bf16.msra.mxu0 %v741
    %1005 = vmatprep.subr.bf16.mxu0 %v750
    %1006 = vmatpush1.bf16.msra.mxu0 %v749
    %1007 = vmatprep.subr.bf16.mxu0 %v758
    %1008 = vmatpush1.bf16.msra.mxu0 %v757
    %1009 = vmatprep.subr.bf16.mxu0 %v766
    %1010 = vmatpush1.bf16.msra.mxu0 %v765
    %1011 = vmatprep.mubr.bf16.mxu0 %v86
    %1012 = vmatmul.mubr.bf16.gmra.mrb[0].mxu0 %v85
    %v1013 = vpop.f32.mrb[0].mxu0
    %v1014 = vadd.f32 %v236, %v1013
    %v1015 = vpop.f32.mrb[0].mxu0
    %v1016 = vadd.f32 %v240, %v1015
    %v1017 = vpop.f32.mrb[0].mxu0
    %v1018 = vpop.f32.mrb[0].mxu0
    %1019 = vdwg.mxu0
    %1020 = vmatprep.subr.bf16.mxu0 %v648
    %1021 = vmatpush1.bf16.msra.mxu0 %v647
    %1022 = vmatprep.subr.bf16.mxu0 %v656
    %1023 = vmatpush1.bf16.msra.mxu0 %v655
    %1024 = vmatprep.subr.bf16.mxu0 %v664
    %1025 = vmatpush1.bf16.msra.mxu0 %v663
    %1026 = vmatprep.subr.bf16.mxu0 %v672
    %1027 = vmatpush1.bf16.msra.mxu0 %v671
    %1028 = vmatprep.subr.bf16.mxu0 %v680
    %1029 = vmatpush1.bf16.msra.mxu0 %v679
    %1030 = vmatprep.subr.bf16.mxu0 %v688
    %1031 = vmatpush1.bf16.msra.mxu0 %v687
    %1032 = vmatprep.subr.bf16.mxu0 %v696
    %1033 = vmatpush1.bf16.msra.mxu0 %v695
    %1034 = vmatprep.subr.bf16.mxu0 %v704
    %1035 = vmatpush1.bf16.msra.mxu0 %v703
    %1036 = vmatprep.subr.bf16.mxu0 %v712
    %1037 = vmatpush1.bf16.msra.mxu0 %v711
    %1038 = vmatprep.subr.bf16.mxu0 %v720
    %1039 = vmatpush1.bf16.msra.mxu0 %v719
    %1040 = vmatprep.subr.bf16.mxu0 %v728
    %1041 = vmatpush1.bf16.msra.mxu0 %v727
    %1042 = vmatprep.subr.bf16.mxu0 %v736
    %1043 = vmatpush1.bf16.msra.mxu0 %v735
    %1044 = vmatprep.subr.bf16.mxu0 %v744
    %1045 = vmatpush1.bf16.msra.mxu0 %v743
    %1046 = vmatprep.subr.bf16.mxu0 %v752
    %1047 = vmatpush1.bf16.msra.mxu0 %v751
    %1048 = vmatprep.subr.bf16.mxu0 %v760
    %1049 = vmatpush1.bf16.msra.mxu0 %v759
    %1050 = vmatprep.subr.bf16.mxu0 %v768
    %1051 = vmatpush1.bf16.msra.mxu0 %v767
    %1052 = vmatprep.mubr.bf16.mxu0 %v86
    %1053 = vmatmul.mubr.bf16.gmra.mrb[0].mxu0 %v85
    %v1054 = vpop.f32.mrb[0].mxu0
    %v1055 = vadd.f32 %v244, %v1054
    %v1056 = vpop.f32.mrb[0].mxu0
    %v1057 = vadd.f32 %v248, %v1056
    %v1058 = vpop.f32.mrb[0].mxu0
    %v1059 = vpop.f32.mrb[0].mxu0
    %1060 = vdwg.mxu0
    %v1061 = vmax.f32 %v932, 0.0
    %v1062 = vmax.f32 %v934, 0.0
    %v1063 = vmax.f32 %v973, 0.0
    %v1064 = vmax.f32 %v975, 0.0
    %v1065 = vmax.f32 %v1014, 0.0
    %v1066 = vmax.f32 %v1016, 0.0
    %v1067 = vmax.f32 %v1055, 0.0
    %v1068 = vmax.f32 %v1057, 0.0
    %v1069 = vpack.c.bf16 %v1061, %v1061
    %v1070 = vpack.c.bf16 %v1062, %v1062
    %v1071 = vpack.c.bf16 %v1063, %v1063
    %v1072 = vpack.c.bf16 %v1064, %v1064
    %v1073 = vpack.c.bf16 %v1065, %v1065
    %v1074 = vpack.c.bf16 %v1066, %v1066
    %v1075 = vpack.c.bf16 %v1067, %v1067
    %v1076 = vpack.c.bf16 %v1068, %v1068
    %v1077 = vld [vmem:[#allocation8] sm:$0xf]
    %v1078 = vld [vmem:[#allocation8 + $0x4] sm:$0xf]
    %v1079 = vld [vmem:[#allocation8 + $0x8] sm:$0xf]
    %v1080 = vld [vmem:[#allocation8 + $0xc] sm:$0xf]
    %v1081 = vld [vmem:[#allocation8 + $0x10] sm:$0xf]
    %v1082 = vld [vmem:[#allocation8 + $0x14] sm:$0xf]
    %v1083 = vld [vmem:[#allocation8 + $0x18] sm:$0xf]
    %v1084 = vld [vmem:[#allocation8 + $0x1c] sm:$0xf]
    %v1085 = vld [vmem:[#allocation8 + $0x20] sm:$0xf]
    %v1086 = vld [vmem:[#allocation8 + $0x24] sm:$0xf]
    %v1087 = vld [vmem:[#allocation8 + $0x28] sm:$0xf]
    %v1088 = vld [vmem:[#allocation8 + $0x2c] sm:$0xf]
    %v1089 = vld [vmem:[#allocation8 + $0x30] sm:$0xf]
    %v1090 = vld [vmem:[#allocation8 + $0x34] sm:$0xf]
    %v1091 = vld [vmem:[#allocation8 + $0x38] sm:$0xf]
    %v1092 = vld [vmem:[#allocation8 + $0x3c] sm:$0xf]
    %v1093 = vld [vmem:[#allocation8 + $0x40] sm:$0xf]
    %v1094 = vld [vmem:[#allocation8 + $0x44] sm:$0xf]
    %v1095 = vld [vmem:[#allocation8 + $0x48] sm:$0xf]
    %v1096 = vld [vmem:[#allocation8 + $0x4c] sm:$0xf]
    %v1097 = vld [vmem:[#allocation8 + $0x50] sm:$0xf]
    %v1098 = vld [vmem:[#allocation8 + $0x54] sm:$0xf]
    %v1099 = vld [vmem:[#allocation8 + $0x58] sm:$0xf]
    %v1100 = vld [vmem:[#allocation8 + $0x5c] sm:$0xf]
    %v1101 = vld [vmem:[#allocation8 + $0x60] sm:$0xf]
    %v1102 = vld [vmem:[#allocation8 + $0x64] sm:$0xf]
    %v1103 = vld [vmem:[#allocation8 + $0x68] sm:$0xf]
    %v1104 = vld [vmem:[#allocation8 + $0x6c] sm:$0xf]
    %v1105 = vld [vmem:[#allocation8 + $0x70] sm:$0xf]
    %v1106 = vld [vmem:[#allocation8 + $0x74] sm:$0xf]
    %v1107 = vld [vmem:[#allocation8 + $0x78] sm:$0xf]
    %v1108 = vld [vmem:[#allocation8 + $0x7c] sm:$0xf]
    %v1109 = vld [vmem:[#allocation8 + $0x80] sm:$0xf]
    %v1110 = vld [vmem:[#allocation8 + $0x84] sm:$0xf]
    %v1111 = vld [vmem:[#allocation8 + $0x88] sm:$0xf]
    %v1112 = vld [vmem:[#allocation8 + $0x8c] sm:$0xf]
    %v1113 = vld [vmem:[#allocation8 + $0x90] sm:$0xf]
    %v1114 = vld [vmem:[#allocation8 + $0x94] sm:$0xf]
    %v1115 = vld [vmem:[#allocation8 + $0x98] sm:$0xf]
    %v1116 = vld [vmem:[#allocation8 + $0x9c] sm:$0xf]
    %v1117 = vld [vmem:[#allocation8 + $0xa0] sm:$0xf]
    %v1118 = vld [vmem:[#allocation8 + $0xa4] sm:$0xf]
    %v1119 = vld [vmem:[#allocation8 + $0xa8] sm:$0xf]
    %v1120 = vld [vmem:[#allocation8 + $0xac] sm:$0xf]
    %v1121 = vld [vmem:[#allocation8 + $0xb0] sm:$0xf]
    %v1122 = vld [vmem:[#allocation8 + $0xb4] sm:$0xf]
    %v1123 = vld [vmem:[#allocation8 + $0xb8] sm:$0xf]
    %v1124 = vld [vmem:[#allocation8 + $0xbc] sm:$0xf]
    %v1125 = vld [vmem:[#allocation8 + $0xc0] sm:$0xf]
    %v1126 = vld [vmem:[#allocation8 + $0xc4] sm:$0xf]
    %v1127 = vld [vmem:[#allocation8 + $0xc8] sm:$0xf]
    %v1128 = vld [vmem:[#allocation8 + $0xcc] sm:$0xf]
    %v1129 = vld [vmem:[#allocation8 + $0xd0] sm:$0xf]
    %v1130 = vld [vmem:[#allocation8 + $0xd4] sm:$0xf]
    %v1131 = vld [vmem:[#allocation8 + $0xd8] sm:$0xf]
    %v1132 = vld [vmem:[#allocation8 + $0xdc] sm:$0xf]
    %v1133 = vld [vmem:[#allocation8 + $0xe0] sm:$0xf]
    %v1134 = vld [vmem:[#allocation8 + $0xe4] sm:$0xf]
    %v1135 = vld [vmem:[#allocation8 + $0xe8] sm:$0xf]
    %v1136 = vld [vmem:[#allocation8 + $0xec] sm:$0xf]
    %v1137 = vld [vmem:[#allocation8 + $0xf0] sm:$0xf]
    %v1138 = vld [vmem:[#allocation8 + $0xf4] sm:$0xf]
    %v1139 = vld [vmem:[#allocation8 + $0xf8] sm:$0xf]
    %v1140 = vld [vmem:[#allocation8 + $0xfc] sm:$0xf]
    %v1141 = vld [vmem:[#allocation8 + $0x100] sm:$0xf]
    %v1142 = vld [vmem:[#allocation8 + $0x104] sm:$0xf]
    %v1143 = vld [vmem:[#allocation8 + $0x108] sm:$0xf]
    %v1144 = vld [vmem:[#allocation8 + $0x10c] sm:$0xf]
    %v1145 = vld [vmem:[#allocation8 + $0x110] sm:$0xf]
    %v1146 = vld [vmem:[#allocation8 + $0x114] sm:$0xf]
    %v1147 = vld [vmem:[#allocation8 + $0x118] sm:$0xf]
    %v1148 = vld [vmem:[#allocation8 + $0x11c] sm:$0xf]
    %v1149 = vld [vmem:[#allocation8 + $0x120] sm:$0xf]
    %v1150 = vld [vmem:[#allocation8 + $0x124] sm:$0xf]
    %v1151 = vld [vmem:[#allocation8 + $0x128] sm:$0xf]
    %v1152 = vld [vmem:[#allocation8 + $0x12c] sm:$0xf]
    %v1153 = vld [vmem:[#allocation8 + $0x130] sm:$0xf]
    %v1154 = vld [vmem:[#allocation8 + $0x134] sm:$0xf]
    %v1155 = vld [vmem:[#allocation8 + $0x138] sm:$0xf]
    %v1156 = vld [vmem:[#allocation8 + $0x13c] sm:$0xf]
    %v1157 = vld [vmem:[#allocation8 + $0x140] sm:$0xf]
    %v1158 = vld [vmem:[#allocation8 + $0x144] sm:$0xf]
    %v1159 = vld [vmem:[#allocation8 + $0x148] sm:$0xf]
    %v1160 = vld [vmem:[#allocation8 + $0x14c] sm:$0xf]
    %v1161 = vld [vmem:[#allocation8 + $0x150] sm:$0xf]
    %v1162 = vld [vmem:[#allocation8 + $0x154] sm:$0xf]
    %v1163 = vld [vmem:[#allocation8 + $0x158] sm:$0xf]
    %v1164 = vld [vmem:[#allocation8 + $0x15c] sm:$0xf]
    %v1165 = vld [vmem:[#allocation8 + $0x160] sm:$0xf]
    %v1166 = vld [vmem:[#allocation8 + $0x164] sm:$0xf]
    %v1167 = vld [vmem:[#allocation8 + $0x168] sm:$0xf]
    %v1168 = vld [vmem:[#allocation8 + $0x16c] sm:$0xf]
    %v1169 = vld [vmem:[#allocation8 + $0x170] sm:$0xf]
    %v1170 = vld [vmem:[#allocation8 + $0x174] sm:$0xf]
    %v1171 = vld [vmem:[#allocation8 + $0x178] sm:$0xf]
    %v1172 = vld [vmem:[#allocation8 + $0x17c] sm:$0xf]
    %v1173 = vld [vmem:[#allocation8 + $0x180] sm:$0xf]
    %v1174 = vld [vmem:[#allocation8 + $0x184] sm:$0xf]
    %v1175 = vld [vmem:[#allocation8 + $0x188] sm:$0xf]
    %v1176 = vld [vmem:[#allocation8 + $0x18c] sm:$0xf]
    %v1177 = vld [vmem:[#allocation8 + $0x190] sm:$0xf]
    %v1178 = vld [vmem:[#allocation8 + $0x194] sm:$0xf]
    %v1179 = vld [vmem:[#allocation8 + $0x198] sm:$0xf]
    %v1180 = vld [vmem:[#allocation8 + $0x19c] sm:$0xf]
    %v1181 = vld [vmem:[#allocation8 + $0x1a0] sm:$0xf]
    %v1182 = vld [vmem:[#allocation8 + $0x1a4] sm:$0xf]
    %v1183 = vld [vmem:[#allocation8 + $0x1a8] sm:$0xf]
    %v1184 = vld [vmem:[#allocation8 + $0x1ac] sm:$0xf]
    %v1185 = vld [vmem:[#allocation8 + $0x1b0] sm:$0xf]
    %v1186 = vld [vmem:[#allocation8 + $0x1b4] sm:$0xf]
    %v1187 = vld [vmem:[#allocation8 + $0x1b8] sm:$0xf]
    %v1188 = vld [vmem:[#allocation8 + $0x1bc] sm:$0xf]
    %v1189 = vld [vmem:[#allocation8 + $0x1c0] sm:$0xf]
    %v1190 = vld [vmem:[#allocation8 + $0x1c4] sm:$0xf]
    %v1191 = vld [vmem:[#allocation8 + $0x1c8] sm:$0xf]
    %v1192 = vld [vmem:[#allocation8 + $0x1cc] sm:$0xf]
    %v1193 = vld [vmem:[#allocation8 + $0x1d0] sm:$0xf]
    %v1194 = vld [vmem:[#allocation8 + $0x1d4] sm:$0xf]
    %v1195 = vld [vmem:[#allocation8 + $0x1d8] sm:$0xf]
    %v1196 = vld [vmem:[#allocation8 + $0x1dc] sm:$0xf]
    %v1197 = vld [vmem:[#allocation8 + $0x1e0] sm:$0xf]
    %v1198 = vld [vmem:[#allocation8 + $0x1e4] sm:$0xf]
    %v1199 = vld [vmem:[#allocation8 + $0x1e8] sm:$0xf]
    %v1200 = vld [vmem:[#allocation8 + $0x1ec] sm:$0xf]
    %v1201 = vld [vmem:[#allocation8 + $0x1f0] sm:$0xf]
    %v1202 = vld [vmem:[#allocation8 + $0x1f4] sm:$0xf]
    %v1203 = vld [vmem:[#allocation8 + $0x1f8] sm:$0xf]
    %v1204 = vld [vmem:[#allocation8 + $0x1fc] sm:$0xf]
    %v1205 = vld [vmem:[%s4] sm:$0x1]
    %v1207 = vlaneseq
    %v1208 = vshrl.u32 %v1207, 7
    %v1209 = vsub.s32 0, %v1208
    %v1210 = vrot.slane %v1205, %v1209
    %v1340 = vunpack.c.l.b16 %v1077
    %v1341 = vunpack.c.l.b16 %v1078
    %v1342 = vunpack.c.l.b16 %v1079
    %v1343 = vunpack.c.l.b16 %v1080
    %v1344 = vunpack.c.l.b16 %v1081
    %v1345 = vunpack.c.l.b16 %v1082
    %v1346 = vunpack.c.l.b16 %v1083
    %v1347 = vunpack.c.l.b16 %v1084
    %v1348 = vunpack.c.l.b16 %v1085
    %v1349 = vunpack.c.l.b16 %v1086
    %v1350 = vunpack.c.l.b16 %v1087
    %v1351 = vunpack.c.l.b16 %v1088
    %v1352 = vunpack.c.l.b16 %v1089
    %v1353 = vunpack.c.l.b16 %v1090
    %v1354 = vunpack.c.l.b16 %v1091
    %v1355 = vunpack.c.l.b16 %v1092
    %v1356 = vunpack.c.l.b16 %v1093
    %v1357 = vunpack.c.l.b16 %v1094
    %v1358 = vunpack.c.l.b16 %v1095
    %v1359 = vunpack.c.l.b16 %v1096
    %v1360 = vunpack.c.l.b16 %v1097
    %v1361 = vunpack.c.l.b16 %v1098
    %v1362 = vunpack.c.l.b16 %v1099
    %v1363 = vunpack.c.l.b16 %v1100
    %v1364 = vunpack.c.l.b16 %v1101
    %v1365 = vunpack.c.l.b16 %v1102
    %v1366 = vunpack.c.l.b16 %v1103
    %v1367 = vunpack.c.l.b16 %v1104
    %v1368 = vunpack.c.l.b16 %v1105
    %v1369 = vunpack.c.l.b16 %v1106
    %v1370 = vunpack.c.l.b16 %v1107
    %v1371 = vunpack.c.l.b16 %v1108
    %v1372 = vunpack.c.l.b16 %v1109
    %v1373 = vunpack.c.l.b16 %v1110
    %v1374 = vunpack.c.l.b16 %v1111
    %v1375 = vunpack.c.l.b16 %v1112
    %v1376 = vunpack.c.l.b16 %v1113
    %v1377 = vunpack.c.l.b16 %v1114
    %v1378 = vunpack.c.l.b16 %v1115
    %v1379 = vunpack.c.l.b16 %v1116
    %v1380 = vunpack.c.l.b16 %v1117
    %v1381 = vunpack.c.l.b16 %v1118
    %v1382 = vunpack.c.l.b16 %v1119
    %v1383 = vunpack.c.l.b16 %v1120
    %v1384 = vunpack.c.l.b16 %v1121
    %v1385 = vunpack.c.l.b16 %v1122
    %v1386 = vunpack.c.l.b16 %v1123
    %v1387 = vunpack.c.l.b16 %v1124
    %v1388 = vunpack.c.l.b16 %v1125
    %v1389 = vunpack.c.l.b16 %v1126
    %v1390 = vunpack.c.l.b16 %v1127
    %v1391 = vunpack.c.l.b16 %v1128
    %v1392 = vunpack.c.l.b16 %v1129
    %v1393 = vunpack.c.l.b16 %v1130
    %v1394 = vunpack.c.l.b16 %v1131
    %v1395 = vunpack.c.l.b16 %v1132
    %v1396 = vunpack.c.l.b16 %v1133
    %v1397 = vunpack.c.l.b16 %v1134
    %v1398 = vunpack.c.l.b16 %v1135
    %v1399 = vunpack.c.l.b16 %v1136
    %v1400 = vunpack.c.l.b16 %v1137
    %v1401 = vunpack.c.l.b16 %v1138
    %v1402 = vunpack.c.l.b16 %v1139
    %v1403 = vunpack.c.l.b16 %v1140
    %v1404 = vunpack.c.l.b16 %v1141
    %v1405 = vunpack.c.l.b16 %v1142
    %v1406 = vunpack.c.l.b16 %v1143
    %v1407 = vunpack.c.l.b16 %v1144
    %v1408 = vunpack.c.l.b16 %v1145
    %v1409 = vunpack.c.l.b16 %v1146
    %v1410 = vunpack.c.l.b16 %v1147
    %v1411 = vunpack.c.l.b16 %v1148
    %v1412 = vunpack.c.l.b16 %v1149
    %v1413 = vunpack.c.l.b16 %v1150
    %v1414 = vunpack.c.l.b16 %v1151
    %v1415 = vunpack.c.l.b16 %v1152
    %v1416 = vunpack.c.l.b16 %v1153
    %v1417 = vunpack.c.l.b16 %v1154
    %v1418 = vunpack.c.l.b16 %v1155
    %v1419 = vunpack.c.l.b16 %v1156
    %v1420 = vunpack.c.l.b16 %v1157
    %v1421 = vunpack.c.l.b16 %v1158
    %v1422 = vunpack.c.l.b16 %v1159
    %v1423 = vunpack.c.l.b16 %v1160
    %v1424 = vunpack.c.l.b16 %v1161
    %v1425 = vunpack.c.l.b16 %v1162
    %v1426 = vunpack.c.l.b16 %v1163
    %v1427 = vunpack.c.l.b16 %v1164
    %v1428 = vunpack.c.l.b16 %v1165
    %v1429 = vunpack.c.l.b16 %v1166
    %v1430 = vunpack.c.l.b16 %v1167
    %v1431 = vunpack.c.l.b16 %v1168
    %v1432 = vunpack.c.l.b16 %v1169
    %v1433 = vunpack.c.l.b16 %v1170
    %v1434 = vunpack.c.l.b16 %v1171
    %v1435 = vunpack.c.l.b16 %v1172
    %v1436 = vunpack.c.l.b16 %v1173
    %v1437 = vunpack.c.l.b16 %v1174
    %v1438 = vunpack.c.l.b16 %v1175
    %v1439 = vunpack.c.l.b16 %v1176
    %v1440 = vunpack.c.l.b16 %v1177
    %v1441 = vunpack.c.l.b16 %v1178
    %v1442 = vunpack.c.l.b16 %v1179
    %v1443 = vunpack.c.l.b16 %v1180
    %v1444 = vunpack.c.l.b16 %v1181
    %v1445 = vunpack.c.l.b16 %v1182
    %v1446 = vunpack.c.l.b16 %v1183
    %v1447 = vunpack.c.l.b16 %v1184
    %v1448 = vunpack.c.l.b16 %v1185
    %v1449 = vunpack.c.l.b16 %v1186
    %v1450 = vunpack.c.l.b16 %v1187
    %v1451 = vunpack.c.l.b16 %v1188
    %v1452 = vunpack.c.l.b16 %v1189
    %v1453 = vunpack.c.l.b16 %v1190
    %v1454 = vunpack.c.l.b16 %v1191
    %v1455 = vunpack.c.l.b16 %v1192
    %v1456 = vunpack.c.l.b16 %v1193
    %v1457 = vunpack.c.l.b16 %v1194
    %v1458 = vunpack.c.l.b16 %v1195
    %v1459 = vunpack.c.l.b16 %v1196
    %v1460 = vunpack.c.l.b16 %v1197
    %v1461 = vunpack.c.l.b16 %v1198
    %v1462 = vunpack.c.l.b16 %v1199
    %v1463 = vunpack.c.l.b16 %v1200
    %v1464 = vunpack.c.l.b16 %v1201
    %v1465 = vunpack.c.l.b16 %v1202
    %v1466 = vunpack.c.l.b16 %v1203
    %v1467 = vunpack.c.l.b16 %v1204
    %v1468 = vpack.c.b16 %v1341, %v1340
    %v1469 = vpack.c.b16 %v1343, %v1342
    %v1470 = vpack.c.b16 %v1345, %v1344
    %v1471 = vpack.c.b16 %v1347, %v1346
    %v1472 = vpack.c.b16 %v1349, %v1348
    %v1473 = vpack.c.b16 %v1351, %v1350
    %v1474 = vpack.c.b16 %v1353, %v1352
    %v1475 = vpack.c.b16 %v1355, %v1354
    %v1476 = vpack.c.b16 %v1357, %v1356
    %v1477 = vpack.c.b16 %v1359, %v1358
    %v1478 = vpack.c.b16 %v1361, %v1360
    %v1479 = vpack.c.b16 %v1363, %v1362
    %v1480 = vpack.c.b16 %v1365, %v1364
    %v1481 = vpack.c.b16 %v1367, %v1366
    %v1482 = vpack.c.b16 %v1369, %v1368
    %v1483 = vpack.c.b16 %v1371, %v1370
    %v1484 = vpack.c.b16 %v1373, %v1372
    %v1485 = vpack.c.b16 %v1375, %v1374
    %v1486 = vpack.c.b16 %v1377, %v1376
    %v1487 = vpack.c.b16 %v1379, %v1378
    %v1488 = vpack.c.b16 %v1381, %v1380
    %v1489 = vpack.c.b16 %v1383, %v1382
    %v1490 = vpack.c.b16 %v1385, %v1384
    %v1491 = vpack.c.b16 %v1387, %v1386
    %v1492 = vpack.c.b16 %v1389, %v1388
    %v1493 = vpack.c.b16 %v1391, %v1390
    %v1494 = vpack.c.b16 %v1393, %v1392
    %v1495 = vpack.c.b16 %v1395, %v1394
    %v1496 = vpack.c.b16 %v1397, %v1396
    %v1497 = vpack.c.b16 %v1399, %v1398
    %v1498 = vpack.c.b16 %v1401, %v1400
    %v1499 = vpack.c.b16 %v1403, %v1402
    %v1500 = vpack.c.b16 %v1405, %v1404
    %v1501 = vpack.c.b16 %v1407, %v1406
    %v1502 = vpack.c.b16 %v1409, %v1408
    %v1503 = vpack.c.b16 %v1411, %v1410
    %v1504 = vpack.c.b16 %v1413, %v1412
    %v1505 = vpack.c.b16 %v1415, %v1414
    %v1506 = vpack.c.b16 %v1417, %v1416
    %v1507 = vpack.c.b16 %v1419, %v1418
    %v1508 = vpack.c.b16 %v1421, %v1420
    %v1509 = vpack.c.b16 %v1423, %v1422
    %v1510 = vpack.c.b16 %v1425, %v1424
    %v1511 = vpack.c.b16 %v1427, %v1426
    %v1512 = vpack.c.b16 %v1429, %v1428
    %v1513 = vpack.c.b16 %v1431, %v1430
    %v1514 = vpack.c.b16 %v1433, %v1432
    %v1515 = vpack.c.b16 %v1435, %v1434
    %v1516 = vpack.c.b16 %v1437, %v1436
    %v1517 = vpack.c.b16 %v1439, %v1438
    %v1518 = vpack.c.b16 %v1441, %v1440
    %v1519 = vpack.c.b16 %v1443, %v1442
    %v1520 = vpack.c.b16 %v1445, %v1444
    %v1521 = vpack.c.b16 %v1447, %v1446
    %v1522 = vpack.c.b16 %v1449, %v1448
    %v1523 = vpack.c.b16 %v1451, %v1450
    %v1524 = vpack.c.b16 %v1453, %v1452
    %v1525 = vpack.c.b16 %v1455, %v1454
    %v1526 = vpack.c.b16 %v1457, %v1456
    %v1527 = vpack.c.b16 %v1459, %v1458
    %v1528 = vpack.c.b16 %v1461, %v1460
    %v1529 = vpack.c.b16 %v1463, %v1462
    %v1530 = vpack.c.b16 %v1465, %v1464
    %v1531 = vpack.c.b16 %v1467, %v1466
    %1596 = vmatprep.subr.bf16.mxu0 0
    %1597 = vmatpush1.bf16.msra.mxu0 %v1468
    %1598 = vmatprep.subr.bf16.mxu0 0
    %1599 = vmatpush1.bf16.msra.mxu0 %v1469
    %1600 = vmatprep.subr.bf16.mxu0 0
    %1601 = vmatpush1.bf16.msra.mxu0 %v1470
    %1602 = vmatprep.subr.bf16.mxu0 0
    %1603 = vmatpush1.bf16.msra.mxu0 %v1471
    %1604 = vmatprep.subr.bf16.mxu0 0
    %1605 = vmatpush1.bf16.msra.mxu0 %v1472
    %1606 = vmatprep.subr.bf16.mxu0 0
    %1607 = vmatpush1.bf16.msra.mxu0 %v1473
    %1608 = vmatprep.subr.bf16.mxu0 0
    %1609 = vmatpush1.bf16.msra.mxu0 %v1474
    %1610 = vmatprep.subr.bf16.mxu0 0
    %1611 = vmatpush1.bf16.msra.mxu0 %v1475
    %1612 = vmatprep.subr.bf16.mxu0 0
    %1613 = vmatpush1.bf16.msra.mxu0 %v1476
    %1614 = vmatprep.subr.bf16.mxu0 0
    %1615 = vmatpush1.bf16.msra.mxu0 %v1477
    %1616 = vmatprep.subr.bf16.mxu0 0
    %1617 = vmatpush1.bf16.msra.mxu0 %v1478
    %1618 = vmatprep.subr.bf16.mxu0 0
    %1619 = vmatpush1.bf16.msra.mxu0 %v1479
    %1620 = vmatprep.subr.bf16.mxu0 0
    %1621 = vmatpush1.bf16.msra.mxu0 %v1480
    %1622 = vmatprep.subr.bf16.mxu0 0
    %1623 = vmatpush1.bf16.msra.mxu0 %v1481
    %1624 = vmatprep.subr.bf16.mxu0 0
    %1625 = vmatpush1.bf16.msra.mxu0 %v1482
    %1626 = vmatprep.subr.bf16.mxu0 0
    %1627 = vmatpush1.bf16.msra.mxu0 %v1483
    %1628 = vmatprep.mubr.bf16.mxu0 %v1070
    %1629 = vmatmul.mubr.bf16.gmra.mrb[0].mxu0 %v1069
    %v1630 = vpop.f32.mrb[0].mxu0
    %v1631 = vadd.f32 %v1210, %v1630
    %v1632 = vpop.f32.mrb[0].mxu0
    %v1633 = vpop.f32.mrb[0].mxu0
    %v1634 = vpop.f32.mrb[0].mxu0
    %1635 = vdwg.mxu0
    %1636 = vmatprep.subr.bf16.mxu0 0
    %1637 = vmatpush1.bf16.msra.mxu0 %v1484
    %1638 = vmatprep.subr.bf16.mxu0 0
    %1639 = vmatpush1.bf16.msra.mxu0 %v1485
    %1640 = vmatprep.subr.bf16.mxu0 0
    %1641 = vmatpush1.bf16.msra.mxu0 %v1486
    %1642 = vmatprep.subr.bf16.mxu0 0
    %1643 = vmatpush1.bf16.msra.mxu0 %v1487
    %1644 = vmatprep.subr.bf16.mxu0 0
    %1645 = vmatpush1.bf16.msra.mxu0 %v1488
    %1646 = vmatprep.subr.bf16.mxu0 0
    %1647 = vmatpush1.bf16.msra.mxu0 %v1489
    %1648 = vmatprep.subr.bf16.mxu0 0
    %1649 = vmatpush1.bf16.msra.mxu0 %v1490
    %1650 = vmatprep.subr.bf16.mxu0 0
    %1651 = vmatpush1.bf16.msra.mxu0 %v1491
    %1652 = vmatprep.subr.bf16.mxu0 0
    %1653 = vmatpush1.bf16.msra.mxu0 %v1492
    %1654 = vmatprep.subr.bf16.mxu0 0
    %1655 = vmatpush1.bf16.msra.mxu0 %v1493
    %1656 = vmatprep.subr.bf16.mxu0 0
    %1657 = vmatpush1.bf16.msra.mxu0 %v1494
    %1658 = vmatprep.subr.bf16.mxu0 0
    %1659 = vmatpush1.bf16.msra.mxu0 %v1495
    %1660 = vmatprep.subr.bf16.mxu0 0
    %1661 = vmatpush1.bf16.msra.mxu0 %v1496
    %1662 = vmatprep.subr.bf16.mxu0 0
    %1663 = vmatpush1.bf16.msra.mxu0 %v1497
    %1664 = vmatprep.subr.bf16.mxu0 0
    %1665 = vmatpush1.bf16.msra.mxu0 %v1498
    %1666 = vmatprep.subr.bf16.mxu0 0
    %1667 = vmatpush1.bf16.msra.mxu0 %v1499
    %1668 = vmatprep.mubr.bf16.mxu0 %v1072
    %1669 = vmatmul.mubr.bf16.gmra.mrb[0].mxu0 %v1071
    %v1670 = vpop.f32.mrb[0].mxu0
    %v1671 = vadd.f32 %v1631, %v1670
    %v1672 = vpop.f32.mrb[0].mxu0
    %v1673 = vpop.f32.mrb[0].mxu0
    %v1674 = vpop.f32.mrb[0].mxu0
    %1675 = vdwg.mxu0
    %1676 = vmatprep.subr.bf16.mxu0 0
    %1677 = vmatpush1.bf16.msra.mxu0 %v1500
    %1678 = vmatprep.subr.bf16.mxu0 0
    %1679 = vmatpush1.bf16.msra.mxu0 %v1501
    %1680 = vmatprep.subr.bf16.mxu0 0
    %1681 = vmatpush1.bf16.msra.mxu0 %v1502
    %1682 = vmatprep.subr.bf16.mxu0 0
    %1683 = vmatpush1.bf16.msra.mxu0 %v1503
    %1684 = vmatprep.subr.bf16.mxu0 0
    %1685 = vmatpush1.bf16.msra.mxu0 %v1504
    %1686 = vmatprep.subr.bf16.mxu0 0
    %1687 = vmatpush1.bf16.msra.mxu0 %v1505
    %1688 = vmatprep.subr.bf16.mxu0 0
    %1689 = vmatpush1.bf16.msra.mxu0 %v1506
    %1690 = vmatprep.subr.bf16.mxu0 0
    %1691 = vmatpush1.bf16.msra.mxu0 %v1507
    %1692 = vmatprep.subr.bf16.mxu0 0
    %1693 = vmatpush1.bf16.msra.mxu0 %v1508
    %1694 = vmatprep.subr.bf16.mxu0 0
    %1695 = vmatpush1.bf16.msra.mxu0 %v1509
    %1696 = vmatprep.subr.bf16.mxu0 0
    %1697 = vmatpush1.bf16.msra.mxu0 %v1510
    %1698 = vmatprep.subr.bf16.mxu0 0
    %1699 = vmatpush1.bf16.msra.mxu0 %v1511
    %1700 = vmatprep.subr.bf16.mxu0 0
    %1701 = vmatpush1.bf16.msra.mxu0 %v1512
    %1702 = vmatprep.subr.bf16.mxu0 0
    %1703 = vmatpush1.bf16.msra.mxu0 %v1513
    %1704 = vmatprep.subr.bf16.mxu0 0
    %1705 = vmatpush1.bf16.msra.mxu0 %v1514
    %1706 = vmatprep.subr.bf16.mxu0 0
    %1707 = vmatpush1.bf16.msra.mxu0 %v1515
    %1708 = vmatprep.mubr.bf16.mxu0 %v1074
    %1709 = vmatmul.mubr.bf16.gmra.mrb[0].mxu0 %v1073
    %v1710 = vpop.f32.mrb[0].mxu0
    %v1711 = vadd.f32 %v1671, %v1710
    %v1712 = vpop.f32.mrb[0].mxu0
    %v1713 = vpop.f32.mrb[0].mxu0
    %v1714 = vpop.f32.mrb[0].mxu0
    %1715 = vdwg.mxu0
    %1716 = vmatprep.subr.bf16.mxu0 0
    %1717 = vmatpush1.bf16.msra.mxu0 %v1516
    %1718 = vmatprep.subr.bf16.mxu0 0
    %1719 = vmatpush1.bf16.msra.mxu0 %v1517
    %1720 = vmatprep.subr.bf16.mxu0 0
    %1721 = vmatpush1.bf16.msra.mxu0 %v1518
    %1722 = vmatprep.subr.bf16.mxu0 0
    %1723 = vmatpush1.bf16.msra.mxu0 %v1519
    %1724 = vmatprep.subr.bf16.mxu0 0
    %1725 = vmatpush1.bf16.msra.mxu0 %v1520
    %1726 = vmatprep.subr.bf16.mxu0 0
    %1727 = vmatpush1.bf16.msra.mxu0 %v1521
    %1728 = vmatprep.subr.bf16.mxu0 0
    %1729 = vmatpush1.bf16.msra.mxu0 %v1522
    %1730 = vmatprep.subr.bf16.mxu0 0
    %1731 = vmatpush1.bf16.msra.mxu0 %v1523
    %1732 = vmatprep.subr.bf16.mxu0 0
    %1733 = vmatpush1.bf16.msra.mxu0 %v1524
    %1734 = vmatprep.subr.bf16.mxu0 0
    %1735 = vmatpush1.bf16.msra.mxu0 %v1525
    %1736 = vmatprep.subr.bf16.mxu0 0
    %1737 = vmatpush1.bf16.msra.mxu0 %v1526
    %1738 = vmatprep.subr.bf16.mxu0 0
    %1739 = vmatpush1.bf16.msra.mxu0 %v1527
    %1740 = vmatprep.subr.bf16.mxu0 0
    %1741 = vmatpush1.bf16.msra.mxu0 %v1528
    %1742 = vmatprep.subr.bf16.mxu0 0
    %1743 = vmatpush1.bf16.msra.mxu0 %v1529
    %1744 = vmatprep.subr.bf16.mxu0 0
    %1745 = vmatpush1.bf16.msra.mxu0 %v1530
    %1746 = vmatprep.subr.bf16.mxu0 0
    %1747 = vmatpush1.bf16.msra.mxu0 %v1531
    %1748 = vmatprep.mubr.bf16.mxu0 %v1076
    %1749 = vmatmul.mubr.bf16.gmra.mrb[0].mxu0 %v1075
    %v1750 = vpop.f32.mrb[0].mxu0
    %v1751 = vadd.f32 %v1711, %v1750
    %v1752 = vpop.f32.mrb[0].mxu0
    %v1753 = vpop.f32.mrb[0].mxu0
    %v1754 = vpop.f32.mrb[0].mxu0
    %1755 = vdwg.mxu0
    %vm1756 = vcmask 1041408
    %v1757 = vsel %vm1756, %v1751, -inf
    %1758 = vmax.xlane.f32.xlu0 %v1757
    %v1759 = vpop.xlane.xlu0 %1758
    %v1760 = vsub.f32 %v1751, %v1759
    %v1761 = vmul.f32 %v1760, 1.442695
    %v1762 = vpow.pop %v1761
    %v1763 = vsel %vm1756, %v1762, 0.0
    %1764 = vadd.xlane.f32.xlu0 %v1763
    %v1765 = vpop.xlane.xlu0 %1764
    %v1766 = vrcp.pop %v1765
    %v1767 = vmul.f32 %v1762, %v1766
    %1768 = vst [vmem:[#allocation10] sm:$0x3] %v1767
    // Predicated region
    $region38: #{tpu_custom_call.1} parent=1 // pred_check
      _
    $region39: #{tpu_custom_call.1} parent=1 // pred_check_branch
      %1770 = sbr.rel (0) target = $region41
    $region40: #{tpu_custom_call.1} parent=1 // pred_region
      %s1772 = ssub.s32 32, 32
      %1773 = vsyncadd [#allocation4], %s1772
      %s1775 = sshll.u32 [#allocation10], 4
      %s1776 = int_to_ptr.vmem [resolvable:$true] %s1775
      %1778 = dma.vmem_to_hbm [thread:$0]  %s1776, 32, %s5, [#allocation4]
    $region41: #{tpu_custom_call.1} parent=1 // pred_fallthru
      _
    // Predicated region
    $region42: #{tpu_custom_call.1} parent=1 // pred_check
      _
    $region43: #{tpu_custom_call.1} parent=1 // pred_check_branch
      %1780 = sbr.rel (0) target = $region45
    $region44: #{tpu_custom_call.1} parent=1 // pred_region
      %1781 = dma.done [#allocation4], 32
    $region45: #{tpu_custom_call.1} parent=1 // pred_fallthru
      _
    %1782 = vsyncpa [#allocation3], 1
    %1783 = vsyncpa [#allocation6], 1
    %1784 = vsyncpa [#allocation9], 1
    %1785 = vsyncpa [#allocation4], 1

// kernel: tpu_custom_call.1
$region0: #{tpu_custom_call.1}
  #allocation0 [shape = 'u32[]', space=smem, size = 0x4, offset = 0x4, fixed_abs, tag = 'smem constant byte address 0x4 - core index']
  #allocation1 [shape = 'u32[144,128]{1,0:T(1,128)}', space=vmem, size = 0x12000, scoped, tag = 'internal scratch']
  %s0 = inlined_call_operand.hbm [shape: f32[2,256], index: 0, kind: input, shape index: {}]
  %s1 = inlined_call_operand.hbm [shape: bf16[256,1024], index: 1, kind: input, shape index: {}]
  %s2 = inlined_call_operand.hbm [shape: f32[1,1024], index: 2, kind: input, shape index: {}]
  %s3 = inlined_call_operand.hbm [shape: bf16[1024,128], index: 3, kind: input, shape index: {}]
  %s4 = inlined_call_operand.vmem [shape: f32[1,128], index: 4, kind: input, shape index: {}]
  %s5 = inlined_call_operand.hbm [shape: f32[2,128], index: 5, kind: output, shape index: {}]
  %s6 = sld [smem:[#allocation0]]
  $region46: #{tpu_custom_call.1} parent=0
    _
  %s8 = ssub.s32 1, %s6
  %s9 = scalar_select 0, %s8, %s6
  $region1: #{tpu_custom_call.1} parent=0
    #allocation2 [shape = 'u8[2048]{0}', space=vmem, size = 0x800, scoped, tag = 'input window, operand 0, single buffered']
    #allocation3 [shape = 's32[1]{0}', space=sflag, size = 0x4, scoped, tag = 'scoped memory for tpu_custom_call.1']
    #allocation4 [shape = 's32[1]{0}', space=sflag, size = 0x4, scoped, tag = 'scoped memory for tpu_custom_call.1']
    #allocation5 [shape = 'u8[524288]{0}', space=vmem, size = 0x80000, scoped, tag = 'input window, operand 1, single buffered']
    #allocation6 [shape = 's32[1]{0}', space=sflag, size = 0x4, scoped, tag = 'scoped memory for tpu_custom_call.1']
    #allocation7 [shape = 'u8[4096]{0}', space=vmem, size = 0x1000, scoped, tag = 'input window, operand 2, single buffered']
    #allocation8 [shape = 'u8[262144]{0}', space=vmem, size = 0x40000, scoped, tag = 'input window, operand 3, single buffered']
    #allocation9 [shape = 's32[1]{0}', space=sflag, size = 0x4, scoped, tag = 'scoped memory for tpu_custom_call.1']
    #allocation10 [shape = 'u8[1024]{0}', space=vmem, size = 0x400, scoped, tag = 'output window, operand 0, single buffered']
    %10 = vsyncpa [#allocation3], 0
    %11 = vsyncpa [#allocation6], 0
    %12 = vsyncpa [#allocation9], 0
    %13 = vsyncpa [#allocation4], 0
    // Predicated region
    $region2: #{tpu_custom_call.1} parent=1 // pred_check
      _
    $region3: #{tpu_custom_call.1} parent=1 // pred_check_branch
      %15 = sbr.rel (0) target = $region5
    $region4: #{tpu_custom_call.1} parent=1 // pred_region
      %s17 = ssub.s32 64, 64
      %18 = vsyncadd [#allocation3], %s17
      %s20 = sshll.u32 [#allocation2], 4
      %s21 = int_to_ptr.vmem [resolvable:$true] %s20
      %23 = dma.hbm_to_vmem [thread:$0]  %s0, 64, %s21, [#allocation3]
    $region5: #{tpu_custom_call.1} parent=1 // pred_fallthru
      _
    // Predicated region
    $region6: #{tpu_custom_call.1} parent=1 // pred_check
      _
    $region7: #{tpu_custom_call.1} parent=1 // pred_check_branch
      %25 = sbr.rel (0) target = $region9
    $region8: #{tpu_custom_call.1} parent=1 // pred_region
      %s27 = ssub.s32 16384, 16384
      %28 = vsyncadd [#allocation6], %s27
      %s29 = sshll.u32 [#allocation5], 4
      %s30 = int_to_ptr.vmem [resolvable:$true] %s29
      %35 = dma.hbm_to_vmem [thread:$0]  %s1, 16384, %s30, [#allocation6], 512, 512, 32
    $region9: #{tpu_custom_call.1} parent=1 // pred_fallthru
      _
    // Predicated region
    $region10: #{tpu_custom_call.1} parent=1 // pred_check
      _
    $region11: #{tpu_custom_call.1} parent=1 // pred_check_branch
      %37 = sbr.rel (0) target = $region13
    $region12: #{tpu_custom_call.1} parent=1 // pred_region
      %s39 = ssub.s32 128, 128
      %40 = vsyncadd [#allocation6], %s39
      %s42 = sshll.u32 [#allocation7], 4
      %s43 = int_to_ptr.vmem [resolvable:$true] %s42
      %45 = dma.hbm_to_vmem [thread:$0]  %s2, 128, %s43, [#allocation6]
    $region13: #{tpu_custom_call.1} parent=1 // pred_fallthru
      _
    // Predicated region
    $region14: #{tpu_custom_call.1} parent=1 // pred_check
      _
    $region15: #{tpu_custom_call.1} parent=1 // pred_check_branch
      %47 = sbr.rel (0) target = $region17
    $region16: #{tpu_custom_call.1} parent=1 // pred_region
      %s49 = ssub.s32 8192, 8192
      %50 = vsyncadd [#allocation9], %s49
      %s51 = sshll.u32 [#allocation8], 4
      %s52 = int_to_ptr.vmem [resolvable:$true] %s51
      %57 = dma.hbm_to_vmem [thread:$0]  %s3, 8192, %s52, [#allocation9], 64, 64, 4
    $region17: #{tpu_custom_call.1} parent=1 // pred_fallthru
      _
    // Predicated region
    $region18: #{tpu_custom_call.1} parent=1 // pred_check
      _
    $region19: #{tpu_custom_call.1} parent=1 // pred_check_branch
      %59 = sbr.rel (0) target = $region21
    $region20: #{tpu_custom_call.1} parent=1 // pred_region
      _
    $region21: #{tpu_custom_call.1} parent=1 // pred_fallthru
      _
    // Predicated region
    $region22: #{tpu_custom_call.1} parent=1 // pred_check
      _
    $region23: #{tpu_custom_call.1} parent=1 // pred_check_branch
      %61 = sbr.rel (0) target = $region25
    $region24: #{tpu_custom_call.1} parent=1 // pred_region
      %62 = dma.done [#allocation3], 64
    $region25: #{tpu_custom_call.1} parent=1 // pred_fallthru
      _
    // Predicated region
    $region26: #{tpu_custom_call.1} parent=1 // pred_check
      _
    $region27: #{tpu_custom_call.1} parent=1 // pred_check_branch
      %64 = sbr.rel (0) target = $region29
    $region28: #{tpu_custom_call.1} parent=1 // pred_region
      %65 = dma.done [#allocation6], 16384
    $region29: #{tpu_custom_call.1} parent=1 // pred_fallthru
      _
    // Predicated region
    $region30: #{tpu_custom_call.1} parent=1 // pred_check
      _
    $region31: #{tpu_custom_call.1} parent=1 // pred_check_branch
      %67 = sbr.rel (0) target = $region33
    $region32: #{tpu_custom_call.1} parent=1 // pred_region
      %68 = dma.done [#allocation6], 128
    $region33: #{tpu_custom_call.1} parent=1 // pred_fallthru
      _
    // Predicated region
    $region34: #{tpu_custom_call.1} parent=1 // pred_check
      _
    $region35: #{tpu_custom_call.1} parent=1 // pred_check_branch
      %70 = sbr.rel (0) target = $region37
    $region36: #{tpu_custom_call.1} parent=1 // pred_region
      %71 = dma.done [#allocation9], 8192
    $region37: #{tpu_custom_call.1} parent=1 // pred_fallthru
      _
    %v73 = vld [vmem:[#allocation2] sm:$0xf]
    %v76 = vunpack.c.l.s4 1983009808
    %v77 = vunpack.c.0.s8 %v76
    %v78 = vlaneseq
    %v79 = vshrl.u32 %v78, 7
    %v80 = vsub.s32 %v77, %v79
    %v81 = vrot.slane %v73, %v80
    %v82 = vcombine.high %v81, %v81
    %v85 = vpack.c.bf16 %v81, %v81
    %v86 = vpack.c.bf16 %v82, %v82
    %v87 = vld [vmem:[#allocation5] sm:$0xff]
    %v88 = vld [vmem:[#allocation5 + $0x8] sm:$0xff]
    %v89 = vld [vmem:[#allocation5 + $0x10] sm:$0xff]
    %v90 = vld [vmem:[#allocation5 + $0x18] sm:$0xff]
    %v91 = vld [vmem:[#allocation5 + $0x20] sm:$0xff]
    %v92 = vld [vmem:[#allocation5 + $0x28] sm:$0xff]
    %v93 = vld [vmem:[#allocation5 + $0x30] sm:$0xff]
    %v94 = vld [vmem:[#allocation5 + $0x38] sm:$0xff]
    %v95 = vld [vmem:[#allocation5 + $0x40] sm:$0xff]
    %v96 = vld [vmem:[#allocation5 + $0x48] sm:$0xff]
    %v97 = vld [vmem:[#allocation5 + $0x50] sm:$0xff]
    %v98 = vld [vmem:[#allocation5 + $0x58] sm:$0xff]
    %v99 = vld [vmem:[#allocation5 + $0x60] sm:$0xff]
    %v100 = vld [vmem:[#allocation5 + $0x68] sm:$0xff]
    %v101 = vld [vmem:[#allocation5 + $0x70] sm:$0xff]
    %v102 = vld [vmem:[#allocation5 + $0x78] sm:$0xff]
    %v103 = vld [vmem:[#allocation5 + $0x80] sm:$0xff]
    %v104 = vld [vmem:[#allocation5 + $0x88] sm:$0xff]
    %v105 = vld [vmem:[#allocation5 + $0x90] sm:$0xff]
    %v106 = vld [vmem:[#allocation5 + $0x98] sm:$0xff]
    %v107 = vld [vmem:[#allocation5 + $0xa0] sm:$0xff]
    %v108 = vld [vmem:[#allocation5 + $0xa8] sm:$0xff]
    %v109 = vld [vmem:[#allocation5 + $0xb0] sm:$0xff]
    %v110 = vld [vmem:[#allocation5 + $0xb8] sm:$0xff]
    %v111 = vld [vmem:[#allocation5 + $0xc0] sm:$0xff]
    %v112 = vld [vmem:[#allocation5 + $0xc8] sm:$0xff]
    %v113 = vld [vmem:[#allocation5 + $0xd0] sm:$0xff]
    %v114 = vld [vmem:[#allocation5 + $0xd8] sm:$0xff]
    %v115 = vld [vmem:[#allocation5 + $0xe0] sm:$0xff]
    %v116 = vld [vmem:[#allocation5 + $0xe8] sm:$0xff]
    %v117 = vld [vmem:[#allocation5 + $0xf0] sm:$0xff]
    %v118 = vld [vmem:[#allocation5 + $0xf8] sm:$0xff]
    %v119 = vld [vmem:[#allocation5 + $0x100] sm:$0xff]
    %v120 = vld [vmem:[#allocation5 + $0x108] sm:$0xff]
    %v121 = vld [vmem:[#allocation5 + $0x110] sm:$0xff]
    %v122 = vld [vmem:[#allocation5 + $0x118] sm:$0xff]
    %v123 = vld [vmem:[#allocation5 + $0x120] sm:$0xff]
    %v124 = vld [vmem:[#allocation5 + $0x128] sm:$0xff]
    %v125 = vld [vmem:[#allocation5 + $0x130] sm:$0xff]
    %v126 = vld [vmem:[#allocation5 + $0x138] sm:$0xff]
    %v127 = vld [vmem:[#allocation5 + $0x140] sm:$0xff]
    %v128 = vld [vmem:[#allocation5 + $0x148] sm:$0xff]
    %v129 = vld [vmem:[#allocation5 + $0x150] sm:$0xff]
    %v130 = vld [vmem:[#allocation5 + $0x158] sm:$0xff]
    %v131 = vld [vmem:[#allocation5 + $0x160] sm:$0xff]
    %v132 = vld [vmem:[#allocation5 + $0x168] sm:$0xff]
    %v133 = vld [vmem:[#allocation5 + $0x170] sm:$0xff]
    %v134 = vld [vmem:[#allocation5 + $0x178] sm:$0xff]
    %v135 = vld [vmem:[#allocation5 + $0x180] sm:$0xff]
    %v136 = vld [vmem:[#allocation5 + $0x188] sm:$0xff]
    %v137 = vld [vmem:[#allocation5 + $0x190] sm:$0xff]
    %v138 = vld [vmem:[#allocation5 + $0x198] sm:$0xff]
    %v139 = vld [vmem:[#allocation5 + $0x1a0] sm:$0xff]
    %v140 = vld [vmem:[#allocation5 + $0x1a8] sm:$0xff]
    %v141 = vld [vmem:[#allocation5 + $0x1b0] sm:$0xff]
    %v142 = vld [vmem:[#allocation5 + $0x1b8] sm:$0xff]
    %v143 = vld [vmem:[#allocation5 + $0x1c0] sm:$0xff]
    %v144 = vld [vmem:[#allocation5 + $0x1c8] sm:$0xff]
    %v145 = vld [vmem:[#allocation5 + $0x1d0] sm:$0xff]
    %v146 = vld [vmem:[#allocation5 + $0x1d8] sm:$0xff]
    %v147 = vld [vmem:[#allocation5 + $0x1e0] sm:$0xff]
    %v148 = vld [vmem:[#allocation5 + $0x1e8] sm:$0xff]
    %v149 = vld [vmem:[#allocation5 + $0x1f0] sm:$0xff]
    %v150 = vld [vmem:[#allocation5 + $0x1f8] sm:$0xff]
    %v151 = vld [vmem:[#allocation5 + $0x200] sm:$0xff]
    %v152 = vld [vmem:[#allocation5 + $0x208] sm:$0xff]
    %v153 = vld [vmem:[#allocation5 + $0x210] sm:$0xff]
    %v154 = vld [vmem:[#allocation5 + $0x218] sm:$0xff]
    %v155 = vld [vmem:[#allocation5 + $0x220] sm:$0xff]
    %v156 = vld [vmem:[#allocation5 + $0x228] sm:$0xff]
    %v157 = vld [vmem:[#allocation5 + $0x230] sm:$0xff]
    %v158 = vld [vmem:[#allocation5 + $0x238] sm:$0xff]
    %v159 = vld [vmem:[#allocation5 + $0x240] sm:$0xff]
    %v160 = vld [vmem:[#allocation5 + $0x248] sm:$0xff]
    %v161 = vld [vmem:[#allocation5 + $0x250] sm:$0xff]
    %v162 = vld [vmem:[#allocation5 + $0x258] sm:$0xff]
    %v163 = vld [vmem:[#allocation5 + $0x260] sm:$0xff]
    %v164 = vld [vmem:[#allocation5 + $0x268] sm:$0xff]
    %v165 = vld [vmem:[#allocation5 + $0x270] sm:$0xff]
    %v166 = vld [vmem:[#allocation5 + $0x278] sm:$0xff]
    %v167 = vld [vmem:[#allocation5 + $0x280] sm:$0xff]
    %v168 = vld [vmem:[#allocation5 + $0x288] sm:$0xff]
    %v169 = vld [vmem:[#allocation5 + $0x290] sm:$0xff]
    %v170 = vld [vmem:[#allocation5 + $0x298] sm:$0xff]
    %v171 = vld [vmem:[#allocation5 + $0x2a0] sm:$0xff]
    %v172 = vld [vmem:[#allocation5 + $0x2a8] sm:$0xff]
    %v173 = vld [vmem:[#allocation5 + $0x2b0] sm:$0xff]
    %v174 = vld [vmem:[#allocation5 + $0x2b8] sm:$0xff]
    %v175 = vld [vmem:[#allocation5 + $0x2c0] sm:$0xff]
    %v176 = vld [vmem:[#allocation5 + $0x2c8] sm:$0xff]
    %v177 = vld [vmem:[#allocation5 + $0x2d0] sm:$0xff]
    %v178 = vld [vmem:[#allocation5 + $0x2d8] sm:$0xff]
    %v179 = vld [vmem:[#allocation5 + $0x2e0] sm:$0xff]
    %v180 = vld [vmem:[#allocation5 + $0x2e8] sm:$0xff]
    %v181 = vld [vmem:[#allocation5 + $0x2f0] sm:$0xff]
    %v182 = vld [vmem:[#allocation5 + $0x2f8] sm:$0xff]
    %v183 = vld [vmem:[#allocation5 + $0x300] sm:$0xff]
    %v184 = vld [vmem:[#allocation5 + $0x308] sm:$0xff]
    %v185 = vld [vmem:[#allocation5 + $0x310] sm:$0xff]
    %v186 = vld [vmem:[#allocation5 + $0x318] sm:$0xff]
    %v187 = vld [vmem:[#allocation5 + $0x320] sm:$0xff]
    %v188 = vld [vmem:[#allocation5 + $0x328] sm:$0xff]
    %v189 = vld [vmem:[#allocation5 + $0x330] sm:$0xff]
    %v190 = vld [vmem:[#allocation5 + $0x338] sm:$0xff]
    %v191 = vld [vmem:[#allocation5 + $0x340] sm:$0xff]
    %v192 = vld [vmem:[#allocation5 + $0x348] sm:$0xff]
    %v193 = vld [vmem:[#allocation5 + $0x350] sm:$0xff]
    %v194 = vld [vmem:[#allocation5 + $0x358] sm:$0xff]
    %v195 = vld [vmem:[#allocation5 + $0x360] sm:$0xff]
    %v196 = vld [vmem:[#allocation5 + $0x368] sm:$0xff]
    %v197 = vld [vmem:[#allocation5 + $0x370] sm:$0xff]
    %v198 = vld [vmem:[#allocation5 + $0x378] sm:$0xff]
    %v199 = vld [vmem:[#allocation5 + $0x380] sm:$0xff]
    %v200 = vld [vmem:[#allocation5 + $0x388] sm:$0xff]
    %v201 = vld [vmem:[#allocation5 + $0x390] sm:$0xff]
    %v202 = vld [vmem:[#allocation5 + $0x398] sm:$0xff]
    %v203 = vld [vmem:[#allocation5 + $0x3a0] sm:$0xff]
    %v204 = vld [vmem:[#allocation5 + $0x3a8] sm:$0xff]
    %v205 = vld [vmem:[#allocation5 + $0x3b0] sm:$0xff]
    %v206 = vld [vmem:[#allocation5 + $0x3b8] sm:$0xff]
    %v207 = vld [vmem:[#allocation5 + $0x3c0] sm:$0xff]
    %v208 = vld [vmem:[#allocation5 + $0x3c8] sm:$0xff]
    %v209 = vld [vmem:[#allocation5 + $0x3d0] sm:$0xff]
    %v210 = vld [vmem:[#allocation5 + $0x3d8] sm:$0xff]
    %v211 = vld [vmem:[#allocation5 + $0x3e0] sm:$0xff]
    %v212 = vld [vmem:[#allocation5 + $0x3e8] sm:$0xff]
    %v213 = vld [vmem:[#allocation5 + $0x3f0] sm:$0xff]
    %v214 = vld [vmem:[#allocation5 + $0x3f8] sm:$0xff]
    %v215 = vld [vmem:[#allocation7] sm:$0xff]
    %v217 = vlaneseq
    %v218 = vshrl.u32 %v217, 7
    %v219 = vsub.s32 0, %v218
    %v220 = vrot.slane %v215, %v219
    %v221 = vlaneseq
    %v222 = vshrl.u32 %v221, 7
    %v223 = vsub.s32 1, %v222
    %v224 = vrot.slane %v215, %v223
    %v225 = vlaneseq
    %v226 = vshrl.u32 %v225, 7
    %v227 = vsub.s32 2, %v226
    %v228 = vrot.slane %v215, %v227
    %v229 = vlaneseq
    %v230 = vshrl.u32 %v229, 7
    %v231 = vsub.s32 3, %v230
    %v232 = vrot.slane %v215, %v231
    %v233 = vlaneseq
    %v234 = vshrl.u32 %v233, 7
    %v235 = vsub.s32 4, %v234
    %v236 = vrot.slane %v215, %v235
    %v237 = vlaneseq
    %v238 = vshrl.u32 %v237, 7
    %v239 = vsub.s32 5, %v238
    %v240 = vrot.slane %v215, %v239
    %v241 = vlaneseq
    %v242 = vshrl.u32 %v241, 7
    %v243 = vsub.s32 6, %v242
    %v244 = vrot.slane %v215, %v243
    %v245 = vlaneseq
    %v246 = vshrl.u32 %v245, 7
    %v247 = vsub.s32 7, %v246
    %v248 = vrot.slane %v215, %v247
    %v385 = vunpack.c.l.b16 %v87
    %v386 = vunpack.c.h.b16 %v87
    %v387 = vunpack.c.l.b16 %v88
    %v388 = vunpack.c.h.b16 %v88
    %v389 = vunpack.c.l.b16 %v89
    %v390 = vunpack.c.h.b16 %v89
    %v391 = vunpack.c.l.b16 %v90
    %v392 = vunpack.c.h.b16 %v90
    %v393 = vunpack.c.l.b16 %v91
    %v394 = vunpack.c.h.b16 %v91
    %v395 = vunpack.c.l.b16 %v92
    %v396 = vunpack.c.h.b16 %v92
    %v397 = vunpack.c.l.b16 %v93
    %v398 = vunpack.c.h.b16 %v93
    %v399 = vunpack.c.l.b16 %v94
    %v400 = vunpack.c.h.b16 %v94
    %v401 = vunpack.c.l.b16 %v95
    %v402 = vunpack.c.h.b16 %v95
    %v403 = vunpack.c.l.b16 %v96
    %v404 = vunpack.c.h.b16 %v96
    %v405 = vunpack.c.l.b16 %v97
    %v406 = vunpack.c.h.b16 %v97
    %v407 = vunpack.c.l.b16 %v98
    %v408 = vunpack.c.h.b16 %v98
    %v409 = vunpack.c.l.b16 %v99
    %v410 = vunpack.c.h.b16 %v99
    %v411 = vunpack.c.l.b16 %v100
    %v412 = vunpack.c.h.b16 %v100
    %v413 = vunpack.c.l.b16 %v101
    %v414 = vunpack.c.h.b16 %v101
    %v415 = vunpack.c.l.b16 %v102
    %v416 = vunpack.c.h.b16 %v102
    %v417 = vunpack.c.l.b16 %v103
    %v418 = vunpack.c.h.b16 %v103
    %v419 = vunpack.c.l.b16 %v104
    %v420 = vunpack.c.h.b16 %v104
    %v421 = vunpack.c.l.b16 %v105
    %v422 = vunpack.c.h.b16 %v105
    %v423 = vunpack.c.l.b16 %v106
    %v424 = vunpack.c.h.b16 %v106
    %v425 = vunpack.c.l.b16 %v107
    %v426 = vunpack.c.h.b16 %v107
    %v427 = vunpack.c.l.b16 %v108
    %v428 = vunpack.c.h.b16 %v108
    %v429 = vunpack.c.l.b16 %v109
    %v430 = vunpack.c.h.b16 %v109
    %v431 = vunpack.c.l.b16 %v110
    %v432 = vunpack.c.h.b16 %v110
    %v433 = vunpack.c.l.b16 %v111
    %v434 = vunpack.c.h.b16 %v111
    %v435 = vunpack.c.l.b16 %v112
    %v436 = vunpack.c.h.b16 %v112
    %v437 = vunpack.c.l.b16 %v113
    %v438 = vunpack.c.h.b16 %v113
    %v439 = vunpack.c.l.b16 %v114
    %v440 = vunpack.c.h.b16 %v114
    %v441 = vunpack.c.l.b16 %v115
    %v442 = vunpack.c.h.b16 %v115
    %v443 = vunpack.c.l.b16 %v116
    %v444 = vunpack.c.h.b16 %v116
    %v445 = vunpack.c.l.b16 %v117
    %v446 = vunpack.c.h.b16 %v117
    %v447 = vunpack.c.l.b16 %v118
    %v448 = vunpack.c.h.b16 %v118
    %v449 = vunpack.c.l.b16 %v119
    %v450 = vunpack.c.h.b16 %v119
    %v451 = vunpack.c.l.b16 %v120
    %v452 = vunpack.c.h.b16 %v120
    %v453 = vunpack.c.l.b16 %v121
    %v454 = vunpack.c.h.b16 %v121
    %v455 = vunpack.c.l.b16 %v122
    %v456 = vunpack.c.h.b16 %v122
    %v457 = vunpack.c.l.b16 %v123
    %v458 = vunpack.c.h.b16 %v123
    %v459 = vunpack.c.l.b16 %v124
    %v460 = vunpack.c.h.b16 %v124
    %v461 = vunpack.c.l.b16 %v125
    %v462 = vunpack.c.h.b16 %v125
    %v463 = vunpack.c.l.b16 %v126
    %v464 = vunpack.c.h.b16 %v126
    %v465 = vunpack.c.l.b16 %v127
    %v466 = vunpack.c.h.b16 %v127
    %v467 = vunpack.c.l.b16 %v128
    %v468 = vunpack.c.h.b16 %v128
    %v469 = vunpack.c.l.b16 %v129
    %v470 = vunpack.c.h.b16 %v129
    %v471 = vunpack.c.l.b16 %v130
    %v472 = vunpack.c.h.b16 %v130
    %v473 = vunpack.c.l.b16 %v131
    %v474 = vunpack.c.h.b16 %v131
    %v475 = vunpack.c.l.b16 %v132
    %v476 = vunpack.c.h.b16 %v132
    %v477 = vunpack.c.l.b16 %v133
    %v478 = vunpack.c.h.b16 %v133
    %v479 = vunpack.c.l.b16 %v134
    %v480 = vunpack.c.h.b16 %v134
    %v481 = vunpack.c.l.b16 %v135
    %v482 = vunpack.c.h.b16 %v135
    %v483 = vunpack.c.l.b16 %v136
    %v484 = vunpack.c.h.b16 %v136
    %v485 = vunpack.c.l.b16 %v137
    %v486 = vunpack.c.h.b16 %v137
    %v487 = vunpack.c.l.b16 %v138
    %v488 = vunpack.c.h.b16 %v138
    %v489 = vunpack.c.l.b16 %v139
    %v490 = vunpack.c.h.b16 %v139
    %v491 = vunpack.c.l.b16 %v140
    %v492 = vunpack.c.h.b16 %v140
    %v493 = vunpack.c.l.b16 %v141
    %v494 = vunpack.c.h.b16 %v141
    %v495 = vunpack.c.l.b16 %v142
    %v496 = vunpack.c.h.b16 %v142
    %v497 = vunpack.c.l.b16 %v143
    %v498 = vunpack.c.h.b16 %v143
    %v499 = vunpack.c.l.b16 %v144
    %v500 = vunpack.c.h.b16 %v144
    %v501 = vunpack.c.l.b16 %v145
    %v502 = vunpack.c.h.b16 %v145
    %v503 = vunpack.c.l.b16 %v146
    %v504 = vunpack.c.h.b16 %v146
    %v505 = vunpack.c.l.b16 %v147
    %v506 = vunpack.c.h.b16 %v147
    %v507 = vunpack.c.l.b16 %v148
    %v508 = vunpack.c.h.b16 %v148
    %v509 = vunpack.c.l.b16 %v149
    %v510 = vunpack.c.h.b16 %v149
    %v511 = vunpack.c.l.b16 %v150
    %v512 = vunpack.c.h.b16 %v150
    %v513 = vunpack.c.l.b16 %v151
    %v514 = vunpack.c.h.b16 %v151
    %v515 = vunpack.c.l.b16 %v152
    %v516 = vunpack.c.h.b16 %v152
    %v517 = vunpack.c.l.b16 %v153
    %v518 = vunpack.c.h.b16 %v153
    %v519 = vunpack.c.l.b16 %v154
    %v520 = vunpack.c.h.b16 %v154
    %v521 = vunpack.c.l.b16 %v155
    %v522 = vunpack.c.h.b16 %v155
    %v523 = vunpack.c.l.b16 %v156
    %v524 = vunpack.c.h.b16 %v156
    %v525 = vunpack.c.l.b16 %v157
    %v526 = vunpack.c.h.b16 %v157
    %v527 = vunpack.c.l.b16 %v158
    %v528 = vunpack.c.h.b16 %v158
    %v529 = vunpack.c.l.b16 %v159
    %v530 = vunpack.c.h.b16 %v159
    %v531 = vunpack.c.l.b16 %v160
    %v532 = vunpack.c.h.b16 %v160
    %v533 = vunpack.c.l.b16 %v161
    %v534 = vunpack.c.h.b16 %v161
    %v535 = vunpack.c.l.b16 %v162
    %v536 = vunpack.c.h.b16 %v162
    %v537 = vunpack.c.l.b16 %v163
    %v538 = vunpack.c.h.b16 %v163
    %v539 = vunpack.c.l.b16 %v164
    %v540 = vunpack.c.h.b16 %v164
    %v541 = vunpack.c.l.b16 %v165
    %v542 = vunpack.c.h.b16 %v165
    %v543 = vunpack.c.l.b16 %v166
    %v544 = vunpack.c.h.b16 %v166
    %v545 = vunpack.c.l.b16 %v167
    %v546 = vunpack.c.h.b16 %v167
    %v547 = vunpack.c.l.b16 %v168
    %v548 = vunpack.c.h.b16 %v168
    %v549 = vunpack.c.l.b16 %v169
    %v550 = vunpack.c.h.b16 %v169
    %v551 = vunpack.c.l.b16 %v170
    %v552 = vunpack.c.h.b16 %v170
    %v553 = vunpack.c.l.b16 %v171
    %v554 = vunpack.c.h.b16 %v171
    %v555 = vunpack.c.l.b16 %v172
    %v556 = vunpack.c.h.b16 %v172
    %v557 = vunpack.c.l.b16 %v173
    %v558 = vunpack.c.h.b16 %v173
    %v559 = vunpack.c.l.b16 %v174
    %v560 = vunpack.c.h.b16 %v174
    %v561 = vunpack.c.l.b16 %v175
    %v562 = vunpack.c.h.b16 %v175
    %v563 = vunpack.c.l.b16 %v176
    %v564 = vunpack.c.h.b16 %v176
    %v565 = vunpack.c.l.b16 %v177
    %v566 = vunpack.c.h.b16 %v177
    %v567 = vunpack.c.l.b16 %v178
    %v568 = vunpack.c.h.b16 %v178
    %v569 = vunpack.c.l.b16 %v179
    %v570 = vunpack.c.h.b16 %v179
    %v571 = vunpack.c.l.b16 %v180
    %v572 = vunpack.c.h.b16 %v180
    %v573 = vunpack.c.l.b16 %v181
    %v574 = vunpack.c.h.b16 %v181
    %v575 = vunpack.c.l.b16 %v182
    %v576 = vunpack.c.h.b16 %v182
    %v577 = vunpack.c.l.b16 %v183
    %v578 = vunpack.c.h.b16 %v183
    %v579 = vunpack.c.l.b16 %v184
    %v580 = vunpack.c.h.b16 %v184
    %v581 = vunpack.c.l.b16 %v185
    %v582 = vunpack.c.h.b16 %v185
    %v583 = vunpack.c.l.b16 %v186
    %v584 = vunpack.c.h.b16 %v186
    %v585 = vunpack.c.l.b16 %v187
    %v586 = vunpack.c.h.b16 %v187
    %v587 = vunpack.c.l.b16 %v188
    %v588 = vunpack.c.h.b16 %v188
    %v589 = vunpack.c.l.b16 %v189
    %v590 = vunpack.c.h.b16 %v189
    %v591 = vunpack.c.l.b16 %v190
    %v592 = vunpack.c.h.b16 %v190
    %v593 = vunpack.c.l.b16 %v191
    %v594 = vunpack.c.h.b16 %v191
    %v595 = vunpack.c.l.b16 %v192
    %v596 = vunpack.c.h.b16 %v192
    %v597 = vunpack.c.l.b16 %v193
    %v598 = vunpack.c.h.b16 %v193
    %v599 = vunpack.c.l.b16 %v194
    %v600 = vunpack.c.h.b16 %v194
    %v601 = vunpack.c.l.b16 %v195
    %v602 = vunpack.c.h.b16 %v195
    %v603 = vunpack.c.l.b16 %v196
    %v604 = vunpack.c.h.b16 %v196
    %v605 = vunpack.c.l.b16 %v197
    %v606 = vunpack.c.h.b16 %v197
    %v607 = vunpack.c.l.b16 %v198
    %v608 = vunpack.c.h.b16 %v198
    %v609 = vunpack.c.l.b16 %v199
    %v610 = vunpack.c.h.b16 %v199
    %v611 = vunpack.c.l.b16 %v200
    %v612 = vunpack.c.h.b16 %v200
    %v613 = vunpack.c.l.b16 %v201
    %v614 = vunpack.c.h.b16 %v201
    %v615 = vunpack.c.l.b16 %v202
    %v616 = vunpack.c.h.b16 %v202
    %v617 = vunpack.c.l.b16 %v203
    %v618 = vunpack.c.h.b16 %v203
    %v619 = vunpack.c.l.b16 %v204
    %v620 = vunpack.c.h.b16 %v204
    %v621 = vunpack.c.l.b16 %v205
    %v622 = vunpack.c.h.b16 %v205
    %v623 = vunpack.c.l.b16 %v206
    %v624 = vunpack.c.h.b16 %v206
    %v625 = vunpack.c.l.b16 %v207
    %v626 = vunpack.c.h.b16 %v207
    %v627 = vunpack.c.l.b16 %v208
    %v628 = vunpack.c.h.b16 %v208
    %v629 = vunpack.c.l.b16 %v209
    %v630 = vunpack.c.h.b16 %v209
    %v631 = vunpack.c.l.b16 %v210
    %v632 = vunpack.c.h.b16 %v210
    %v633 = vunpack.c.l.b16 %v211
    %v634 = vunpack.c.h.b16 %v211
    %v635 = vunpack.c.l.b16 %v212
    %v636 = vunpack.c.h.b16 %v212
    %v637 = vunpack.c.l.b16 %v213
    %v638 = vunpack.c.h.b16 %v213
    %v639 = vunpack.c.l.b16 %v214
    %v640 = vunpack.c.h.b16 %v214
    %v641 = vpack.c.b16 %v393, %v385
    %v642 = vpack.c.b16 %v394, %v386
    %v643 = vpack.c.b16 %v395, %v387
    %v644 = vpack.c.b16 %v396, %v388
    %v645 = vpack.c.b16 %v397, %v389
    %v646 = vpack.c.b16 %v398, %v390
    %v647 = vpack.c.b16 %v399, %v391
    %v648 = vpack.c.b16 %v400, %v392
    %v649 = vpack.c.b16 %v409, %v401
    %v650 = vpack.c.b16 %v410, %v402
    %v651 = vpack.c.b16 %v411, %v403
    %v652 = vpack.c.b16 %v412, %v404
    %v653 = vpack.c.b16 %v413, %v405
    %v654 = vpack.c.b16 %v414, %v406
    %v655 = vpack.c.b16 %v415, %v407
    %v656 = vpack.c.b16 %v416, %v408
    %v657 = vpack.c.b16 %v425, %v417
    %v658 = vpack.c.b16 %v426, %v418
    %v659 = vpack.c.b16 %v427, %v419
    %v660 = vpack.c.b16 %v428, %v420
    %v661 = vpack.c.b16 %v429, %v421
    %v662 = vpack.c.b16 %v430, %v422
    %v663 = vpack.c.b16 %v431, %v423
    %v664 = vpack.c.b16 %v432, %v424
    %v665 = vpack.c.b16 %v441, %v433
    %v666 = vpack.c.b16 %v442, %v434
    %v667 = vpack.c.b16 %v443, %v435
    %v668 = vpack.c.b16 %v444, %v436
    %v669 = vpack.c.b16 %v445, %v437
    %v670 = vpack.c.b16 %v446, %v438
    %v671 = vpack.c.b16 %v447, %v439
    %v672 = vpack.c.b16 %v448, %v440
    %v673 = vpack.c.b16 %v457, %v449
    %v674 = vpack.c.b16 %v458, %v450
    %v675 = vpack.c.b16 %v459, %v451
    %v676 = vpack.c.b16 %v460, %v452
    %v677 = vpack.c.b16 %v461, %v453
    %v678 = vpack.c.b16 %v462, %v454
    %v679 = vpack.c.b16 %v463, %v455
    %v680 = vpack.c.b16 %v464, %v456
    %v681 = vpack.c.b16 %v473, %v465
    %v682 = vpack.c.b16 %v474, %v466
    %v683 = vpack.c.b16 %v475, %v467
    %v684 = vpack.c.b16 %v476, %v468
    %v685 = vpack.c.b16 %v477, %v469
    %v686 = vpack.c.b16 %v478, %v470
    %v687 = vpack.c.b16 %v479, %v471
    %v688 = vpack.c.b16 %v480, %v472
    %v689 = vpack.c.b16 %v489, %v481
    %v690 = vpack.c.b16 %v490, %v482
    %v691 = vpack.c.b16 %v491, %v483
    %v692 = vpack.c.b16 %v492, %v484
    %v693 = vpack.c.b16 %v493, %v485
    %v694 = vpack.c.b16 %v494, %v486
    %v695 = vpack.c.b16 %v495, %v487
    %v696 = vpack.c.b16 %v496, %v488
    %v697 = vpack.c.b16 %v505, %v497
    %v698 = vpack.c.b16 %v506, %v498
    %v699 = vpack.c.b16 %v507, %v499
    %v700 = vpack.c.b16 %v508, %v500
    %v701 = vpack.c.b16 %v509, %v501
    %v702 = vpack.c.b16 %v510, %v502
    %v703 = vpack.c.b16 %v511, %v503
    %v704 = vpack.c.b16 %v512, %v504
    %v705 = vpack.c.b16 %v521, %v513
    %v706 = vpack.c.b16 %v522, %v514
    %v707 = vpack.c.b16 %v523, %v515
    %v708 = vpack.c.b16 %v524, %v516
    %v709 = vpack.c.b16 %v525, %v517
    %v710 = vpack.c.b16 %v526, %v518
    %v711 = vpack.c.b16 %v527, %v519
    %v712 = vpack.c.b16 %v528, %v520
    %v713 = vpack.c.b16 %v537, %v529
    %v714 = vpack.c.b16 %v538, %v530
    %v715 = vpack.c.b16 %v539, %v531
    %v716 = vpack.c.b16 %v540, %v532
    %v717 = vpack.c.b16 %v541, %v533
    %v718 = vpack.c.b16 %v542, %v534
    %v719 = vpack.c.b16 %v543, %v535
    %v720 = vpack.c.b16 %v544, %v536
    %v721 = vpack.c.b16 %v553, %v545
    %v722 = vpack.c.b16 %v554, %v546
    %v723 = vpack.c.b16 %v555, %v547
    %v724 = vpack.c.b16 %v556, %v548
    %v725 = vpack.c.b16 %v557, %v549
    %v726 = vpack.c.b16 %v558, %v550
    %v727 = vpack.c.b16 %v559, %v551
    %v728 = vpack.c.b16 %v560, %v552
    %v729 = vpack.c.b16 %v569, %v561
    %v730 = vpack.c.b16 %v570, %v562
    %v731 = vpack.c.b16 %v571, %v563
    %v732 = vpack.c.b16 %v572, %v564
    %v733 = vpack.c.b16 %v573, %v565
    %v734 = vpack.c.b16 %v574, %v566
    %v735 = vpack.c.b16 %v575, %v567
    %v736 = vpack.c.b16 %v576, %v568
    %v737 = vpack.c.b16 %v585, %v577
    %v738 = vpack.c.b16 %v586, %v578
    %v739 = vpack.c.b16 %v587, %v579
    %v740 = vpack.c.b16 %v588, %v580
    %v741 = vpack.c.b16 %v589, %v581
    %v742 = vpack.c.b16 %v590, %v582
    %v743 = vpack.c.b16 %v591, %v583
    %v744 = vpack.c.b16 %v592, %v584
    %v745 = vpack.c.b16 %v601, %v593
    %v746 = vpack.c.b16 %v602, %v594
    %v747 = vpack.c.b16 %v603, %v595
    %v748 = vpack.c.b16 %v604, %v596
    %v749 = vpack.c.b16 %v605, %v597
    %v750 = vpack.c.b16 %v606, %v598
    %v751 = vpack.c.b16 %v607, %v599
    %v752 = vpack.c.b16 %v608, %v600
    %v753 = vpack.c.b16 %v617, %v609
    %v754 = vpack.c.b16 %v618, %v610
    %v755 = vpack.c.b16 %v619, %v611
    %v756 = vpack.c.b16 %v620, %v612
    %v757 = vpack.c.b16 %v621, %v613
    %v758 = vpack.c.b16 %v622, %v614
    %v759 = vpack.c.b16 %v623, %v615
    %v760 = vpack.c.b16 %v624, %v616
    %v761 = vpack.c.b16 %v633, %v625
    %v762 = vpack.c.b16 %v634, %v626
    %v763 = vpack.c.b16 %v635, %v627
    %v764 = vpack.c.b16 %v636, %v628
    %v765 = vpack.c.b16 %v637, %v629
    %v766 = vpack.c.b16 %v638, %v630
    %v767 = vpack.c.b16 %v639, %v631
    %v768 = vpack.c.b16 %v640, %v632
    %897 = vmatprep.subr.bf16.mxu0 %v642
    %898 = vmatpush1.bf16.msra.mxu0 %v641
    %899 = vmatprep.subr.bf16.mxu0 %v650
    %900 = vmatpush1.bf16.msra.mxu0 %v649
    %901 = vmatprep.subr.bf16.mxu0 %v658
    %902 = vmatpush1.bf16.msra.mxu0 %v657
    %903 = vmatprep.subr.bf16.mxu0 %v666
    %904 = vmatpush1.bf16.msra.mxu0 %v665
    %905 = vmatprep.subr.bf16.mxu0 %v674
    %906 = vmatpush1.bf16.msra.mxu0 %v673
    %907 = vmatprep.subr.bf16.mxu0 %v682
    %908 = vmatpush1.bf16.msra.mxu0 %v681
    %909 = vmatprep.subr.bf16.mxu0 %v690
    %910 = vmatpush1.bf16.msra.mxu0 %v689
    %911 = vmatprep.subr.bf16.mxu0 %v698
    %912 = vmatpush1.bf16.msra.mxu0 %v697
    %913 = vmatprep.subr.bf16.mxu0 %v706
    %914 = vmatpush1.bf16.msra.mxu0 %v705
    %915 = vmatprep.subr.bf16.mxu0 %v714
    %916 = vmatpush1.bf16.msra.mxu0 %v713
    %917 = vmatprep.subr.bf16.mxu0 %v722
    %918 = vmatpush1.bf16.msra.mxu0 %v721
    %919 = vmatprep.subr.bf16.mxu0 %v730
    %920 = vmatpush1.bf16.msra.mxu0 %v729
    %921 = vmatprep.subr.bf16.mxu0 %v738
    %922 = vmatpush1.bf16.msra.mxu0 %v737
    %923 = vmatprep.subr.bf16.mxu0 %v746
    %924 = vmatpush1.bf16.msra.mxu0 %v745
    %925 = vmatprep.subr.bf16.mxu0 %v754
    %926 = vmatpush1.bf16.msra.mxu0 %v753
    %927 = vmatprep.subr.bf16.mxu0 %v762
    %928 = vmatpush1.bf16.msra.mxu0 %v761
    %929 = vmatprep.mubr.bf16.mxu0 %v86
    %930 = vmatmul.mubr.bf16.gmra.mrb[0].mxu0 %v85
    %v931 = vpop.f32.mrb[0].mxu0
    %v932 = vadd.f32 %v220, %v931
    %v933 = vpop.f32.mrb[0].mxu0
    %v934 = vadd.f32 %v224, %v933
    %v935 = vpop.f32.mrb[0].mxu0
    %v936 = vpop.f32.mrb[0].mxu0
    %937 = vdwg.mxu0
    %938 = vmatprep.subr.bf16.mxu0 %v644
    %939 = vmatpush1.bf16.msra.mxu0 %v643
    %940 = vmatprep.subr.bf16.mxu0 %v652
    %941 = vmatpush1.bf16.msra.mxu0 %v651
    %942 = vmatprep.subr.bf16.mxu0 %v660
    %943 = vmatpush1.bf16.msra.mxu0 %v659
    %944 = vmatprep.subr.bf16.mxu0 %v668
    %945 = vmatpush1.bf16.msra.mxu0 %v667
    %946 = vmatprep.subr.bf16.mxu0 %v676
    %947 = vmatpush1.bf16.msra.mxu0 %v675
    %948 = vmatprep.subr.bf16.mxu0 %v684
    %949 = vmatpush1.bf16.msra.mxu0 %v683
    %950 = vmatprep.subr.bf16.mxu0 %v692
    %951 = vmatpush1.bf16.msra.mxu0 %v691
    %952 = vmatprep.subr.bf16.mxu0 %v700
    %953 = vmatpush1.bf16.msra.mxu0 %v699
    %954 = vmatprep.subr.bf16.mxu0 %v708
    %955 = vmatpush1.bf16.msra.mxu0 %v707
    %956 = vmatprep.subr.bf16.mxu0 %v716
    %957 = vmatpush1.bf16.msra.mxu0 %v715
    %958 = vmatprep.subr.bf16.mxu0 %v724
    %959 = vmatpush1.bf16.msra.mxu0 %v723
    %960 = vmatprep.subr.bf16.mxu0 %v732
    %961 = vmatpush1.bf16.msra.mxu0 %v731
    %962 = vmatprep.subr.bf16.mxu0 %v740
    %963 = vmatpush1.bf16.msra.mxu0 %v739
    %964 = vmatprep.subr.bf16.mxu0 %v748
    %965 = vmatpush1.bf16.msra.mxu0 %v747
    %966 = vmatprep.subr.bf16.mxu0 %v756
    %967 = vmatpush1.bf16.msra.mxu0 %v755
    %968 = vmatprep.subr.bf16.mxu0 %v764
    %969 = vmatpush1.bf16.msra.mxu0 %v763
    %970 = vmatprep.mubr.bf16.mxu0 %v86
    %971 = vmatmul.mubr.bf16.gmra.mrb[0].mxu0 %v85
    %v972 = vpop.f32.mrb[0].mxu0
    %v973 = vadd.f32 %v228, %v972
    %v974 = vpop.f32.mrb[0].mxu0
    %v975 = vadd.f32 %v232, %v974
    %v976 = vpop.f32.mrb[0].mxu0
    %v977 = vpop.f32.mrb[0].mxu0
    %978 = vdwg.mxu0
    %979 = vmatprep.subr.bf16.mxu0 %v646
    %980 = vmatpush1.bf16.msra.mxu0 %v645
    %981 = vmatprep.subr.bf16.mxu0 %v654
    %982 = vmatpush1.bf16.msra.mxu0 %v653
    %983 = vmatprep.subr.bf16.mxu0 %v662
    %984 = vmatpush1.bf16.msra.mxu0 %v661
    %985 = vmatprep.subr.bf16.mxu0 %v670
    %986 = vmatpush1.bf16.msra.mxu0 %v669
    %987 = vmatprep.subr.bf16.mxu0 %v678
    %988 = vmatpush1.bf16.msra.mxu0 %v677
    %989 = vmatprep.subr.bf16.mxu0 %v686
    %990 = vmatpush1.bf16.msra.mxu0 %v685
    %991 = vmatprep.subr.bf16.mxu0 %v694
    %992 = vmatpush1.bf16.msra.mxu0 %v693
    %993 = vmatprep.subr.bf16.mxu0 %v702
    %994 = vmatpush1.bf16.msra.mxu0 %v701
    %995 = vmatprep.subr.bf16.mxu0 %v710
    %996 = vmatpush1.bf16.msra.mxu0 %v709
    %997 = vmatprep.subr.bf16.mxu0 %v718
    %998 = vmatpush1.bf16.msra.mxu0 %v717
    %999 = vmatprep.subr.bf16.mxu0 %v726
    %1000 = vmatpush1.bf16.msra.mxu0 %v725
    %1001 = vmatprep.subr.bf16.mxu0 %v734
    %1002 = vmatpush1.bf16.msra.mxu0 %v733
    %1003 = vmatprep.subr.bf16.mxu0 %v742
    %1004 = vmatpush1.bf16.msra.mxu0 %v741
    %1005 = vmatprep.subr.bf16.mxu0 %v750
    %1006 = vmatpush1.bf16.msra.mxu0 %v749
    %1007 = vmatprep.subr.bf16.mxu0 %v758
    %1008 = vmatpush1.bf16.msra.mxu0 %v757
    %1009 = vmatprep.subr.bf16.mxu0 %v766
    %1010 = vmatpush1.bf16.msra.mxu0 %v765
    %1011 = vmatprep.mubr.bf16.mxu0 %v86
    %1012 = vmatmul.mubr.bf16.gmra.mrb[0].mxu0 %v85
    %v1013 = vpop.f32.mrb[0].mxu0
    %v1014 = vadd.f32 %v236, %v1013
    %v1015 = vpop.f32.mrb[0].mxu0
    %v1016 = vadd.f32 %v240, %v1015
    %v1017 = vpop.f32.mrb[0].mxu0
    %v1018 = vpop.f32.mrb[0].mxu0
    %1019 = vdwg.mxu0
    %1020 = vmatprep.subr.bf16.mxu0 %v648
    %1021 = vmatpush1.bf16.msra.mxu0 %v647
    %1022 = vmatprep.subr.bf16.mxu0 %v656
    %1023 = vmatpush1.bf16.msra.mxu0 %v655
    %1024 = vmatprep.subr.bf16.mxu0 %v664
    %1025 = vmatpush1.bf16.msra.mxu0 %v663
    %1026 = vmatprep.subr.bf16.mxu0 %v672
    %1027 = vmatpush1.bf16.msra.mxu0 %v671
    %1028 = vmatprep.subr.bf16.mxu0 %v680
    %1029 = vmatpush1.bf16.msra.mxu0 %v679
    %1030 = vmatprep.subr.bf16.mxu0 %v688
    %1031 = vmatpush1.bf16.msra.mxu0 %v687
    %1032 = vmatprep.subr.bf16.mxu0 %v696
    %1033 = vmatpush1.bf16.msra.mxu0 %v695
    %1034 = vmatprep.subr.bf16.mxu0 %v704
    %1035 = vmatpush1.bf16.msra.mxu0 %v703
    %1036 = vmatprep.subr.bf16.mxu0 %v712
    %1037 = vmatpush1.bf16.msra.mxu0 %v711
    %1038 = vmatprep.subr.bf16.mxu0 %v720
    %1039 = vmatpush1.bf16.msra.mxu0 %v719
    %1040 = vmatprep.subr.bf16.mxu0 %v728
    %1041 = vmatpush1.bf16.msra.mxu0 %v727
    %1042 = vmatprep.subr.bf16.mxu0 %v736
    %1043 = vmatpush1.bf16.msra.mxu0 %v735
    %1044 = vmatprep.subr.bf16.mxu0 %v744
    %1045 = vmatpush1.bf16.msra.mxu0 %v743
    %1046 = vmatprep.subr.bf16.mxu0 %v752
    %1047 = vmatpush1.bf16.msra.mxu0 %v751
    %1048 = vmatprep.subr.bf16.mxu0 %v760
    %1049 = vmatpush1.bf16.msra.mxu0 %v759
    %1050 = vmatprep.subr.bf16.mxu0 %v768
    %1051 = vmatpush1.bf16.msra.mxu0 %v767
    %1052 = vmatprep.mubr.bf16.mxu0 %v86
    %1053 = vmatmul.mubr.bf16.gmra.mrb[0].mxu0 %v85
    %v1054 = vpop.f32.mrb[0].mxu0
    %v1055 = vadd.f32 %v244, %v1054
    %v1056 = vpop.f32.mrb[0].mxu0
    %v1057 = vadd.f32 %v248, %v1056
    %v1058 = vpop.f32.mrb[0].mxu0
    %v1059 = vpop.f32.mrb[0].mxu0
    %1060 = vdwg.mxu0
    %v1061 = vmax.f32 %v932, 0.0
    %v1062 = vmax.f32 %v934, 0.0
    %v1063 = vmax.f32 %v973, 0.0
    %v1064 = vmax.f32 %v975, 0.0
    %v1065 = vmax.f32 %v1014, 0.0
    %v1066 = vmax.f32 %v1016, 0.0
    %v1067 = vmax.f32 %v1055, 0.0
    %v1068 = vmax.f32 %v1057, 0.0
    %v1069 = vpack.c.bf16 %v1061, %v1061
    %v1070 = vpack.c.bf16 %v1062, %v1062
    %v1071 = vpack.c.bf16 %v1063, %v1063
    %v1072 = vpack.c.bf16 %v1064, %v1064
    %v1073 = vpack.c.bf16 %v1065, %v1065
    %v1074 = vpack.c.bf16 %v1066, %v1066
    %v1075 = vpack.c.bf16 %v1067, %v1067
    %v1076 = vpack.c.bf16 %v1068, %v1068
    %v1077 = vld [vmem:[#allocation8] sm:$0xf]
    %v1078 = vld [vmem:[#allocation8 + $0x4] sm:$0xf]
    %v1079 = vld [vmem:[#allocation8 + $0x8] sm:$0xf]
    %v1080 = vld [vmem:[#allocation8 + $0xc] sm:$0xf]
    %v1081 = vld [vmem:[#allocation8 + $0x10] sm:$0xf]
    %v1082 = vld [vmem:[#allocation8 + $0x14] sm:$0xf]
    %v1083 = vld [vmem:[#allocation8 + $0x18] sm:$0xf]
    %v1084 = vld [vmem:[#allocation8 + $0x1c] sm:$0xf]
    %v1085 = vld [vmem:[#allocation8 + $0x20] sm:$0xf]
    %v1086 = vld [vmem:[#allocation8 + $0x24] sm:$0xf]
    %v1087 = vld [vmem:[#allocation8 + $0x28] sm:$0xf]
    %v1088 = vld [vmem:[#allocation8 + $0x2c] sm:$0xf]
    %v1089 = vld [vmem:[#allocation8 + $0x30] sm:$0xf]
    %v1090 = vld [vmem:[#allocation8 + $0x34] sm:$0xf]
    %v1091 = vld [vmem:[#allocation8 + $0x38] sm:$0xf]
    %v1092 = vld [vmem:[#allocation8 + $0x3c] sm:$0xf]
    %v1093 = vld [vmem:[#allocation8 + $0x40] sm:$0xf]
    %v1094 = vld [vmem:[#allocation8 + $0x44] sm:$0xf]
    %v1095 = vld [vmem:[#allocation8 + $0x48] sm:$0xf]
    %v1096 = vld [vmem:[#allocation8 + $0x4c] sm:$0xf]
    %v1097 = vld [vmem:[#allocation8 + $0x50] sm:$0xf]
    %v1098 = vld [vmem:[#allocation8 + $0x54] sm:$0xf]
    %v1099 = vld [vmem:[#allocation8 + $0x58] sm:$0xf]
    %v1100 = vld [vmem:[#allocation8 + $0x5c] sm:$0xf]
    %v1101 = vld [vmem:[#allocation8 + $0x60] sm:$0xf]
    %v1102 = vld [vmem:[#allocation8 + $0x64] sm:$0xf]
    %v1103 = vld [vmem:[#allocation8 + $0x68] sm:$0xf]
    %v1104 = vld [vmem:[#allocation8 + $0x6c] sm:$0xf]
    %v1105 = vld [vmem:[#allocation8 + $0x70] sm:$0xf]
    %v1106 = vld [vmem:[#allocation8 + $0x74] sm:$0xf]
    %v1107 = vld [vmem:[#allocation8 + $0x78] sm:$0xf]
    %v1108 = vld [vmem:[#allocation8 + $0x7c] sm:$0xf]
    %v1109 = vld [vmem:[#allocation8 + $0x80] sm:$0xf]
    %v1110 = vld [vmem:[#allocation8 + $0x84] sm:$0xf]
    %v1111 = vld [vmem:[#allocation8 + $0x88] sm:$0xf]
    %v1112 = vld [vmem:[#allocation8 + $0x8c] sm:$0xf]
    %v1113 = vld [vmem:[#allocation8 + $0x90] sm:$0xf]
    %v1114 = vld [vmem:[#allocation8 + $0x94] sm:$0xf]
    %v1115 = vld [vmem:[#allocation8 + $0x98] sm:$0xf]
    %v1116 = vld [vmem:[#allocation8 + $0x9c] sm:$0xf]
    %v1117 = vld [vmem:[#allocation8 + $0xa0] sm:$0xf]
    %v1118 = vld [vmem:[#allocation8 + $0xa4] sm:$0xf]
    %v1119 = vld [vmem:[#allocation8 + $0xa8] sm:$0xf]
    %v1120 = vld [vmem:[#allocation8 + $0xac] sm:$0xf]
    %v1121 = vld [vmem:[#allocation8 + $0xb0] sm:$0xf]
    %v1122 = vld [vmem:[#allocation8 + $0xb4] sm:$0xf]
    %v1123 = vld [vmem:[#allocation8 + $0xb8] sm:$0xf]
    %v1124 = vld [vmem:[#allocation8 + $0xbc] sm:$0xf]
    %v1125 = vld [vmem:[#allocation8 + $0xc0] sm:$0xf]
    %v1126 = vld [vmem:[#allocation8 + $0xc4] sm:$0xf]
    %v1127 = vld [vmem:[#allocation8 + $0xc8] sm:$0xf]
    %v1128 = vld [vmem:[#allocation8 + $0xcc] sm:$0xf]
    %v1129 = vld [vmem:[#allocation8 + $0xd0] sm:$0xf]
    %v1130 = vld [vmem:[#allocation8 + $0xd4] sm:$0xf]
    %v1131 = vld [vmem:[#allocation8 + $0xd8] sm:$0xf]
    %v1132 = vld [vmem:[#allocation8 + $0xdc] sm:$0xf]
    %v1133 = vld [vmem:[#allocation8 + $0xe0] sm:$0xf]
    %v1134 = vld [vmem:[#allocation8 + $0xe4] sm:$0xf]
    %v1135 = vld [vmem:[#allocation8 + $0xe8] sm:$0xf]
    %v1136 = vld [vmem:[#allocation8 + $0xec] sm:$0xf]
    %v1137 = vld [vmem:[#allocation8 + $0xf0] sm:$0xf]
    %v1138 = vld [vmem:[#allocation8 + $0xf4] sm:$0xf]
    %v1139 = vld [vmem:[#allocation8 + $0xf8] sm:$0xf]
    %v1140 = vld [vmem:[#allocation8 + $0xfc] sm:$0xf]
    %v1141 = vld [vmem:[#allocation8 + $0x100] sm:$0xf]
    %v1142 = vld [vmem:[#allocation8 + $0x104] sm:$0xf]
    %v1143 = vld [vmem:[#allocation8 + $0x108] sm:$0xf]
    %v1144 = vld [vmem:[#allocation8 + $0x10c] sm:$0xf]
    %v1145 = vld [vmem:[#allocation8 + $0x110] sm:$0xf]
    %v1146 = vld [vmem:[#allocation8 + $0x114] sm:$0xf]
    %v1147 = vld [vmem:[#allocation8 + $0x118] sm:$0xf]
    %v1148 = vld [vmem:[#allocation8 + $0x11c] sm:$0xf]
    %v1149 = vld [vmem:[#allocation8 + $0x120] sm:$0xf]
    %v1150 = vld [vmem:[#allocation8 + $0x124] sm:$0xf]
    %v1151 = vld [vmem:[#allocation8 + $0x128] sm:$0xf]
    %v1152 = vld [vmem:[#allocation8 + $0x12c] sm:$0xf]
    %v1153 = vld [vmem:[#allocation8 + $0x130] sm:$0xf]
    %v1154 = vld [vmem:[#allocation8 + $0x134] sm:$0xf]
    %v1155 = vld [vmem:[#allocation8 + $0x138] sm:$0xf]
    %v1156 = vld [vmem:[#allocation8 + $0x13c] sm:$0xf]
    %v1157 = vld [vmem:[#allocation8 + $0x140] sm:$0xf]
    %v1158 = vld [vmem:[#allocation8 + $0x144] sm:$0xf]
    %v1159 = vld [vmem:[#allocation8 + $0x148] sm:$0xf]
    %v1160 = vld [vmem:[#allocation8 + $0x14c] sm:$0xf]
    %v1161 = vld [vmem:[#allocation8 + $0x150] sm:$0xf]
    %v1162 = vld [vmem:[#allocation8 + $0x154] sm:$0xf]
    %v1163 = vld [vmem:[#allocation8 + $0x158] sm:$0xf]
    %v1164 = vld [vmem:[#allocation8 + $0x15c] sm:$0xf]
    %v1165 = vld [vmem:[#allocation8 + $0x160] sm:$0xf]
    %v1166 = vld [vmem:[#allocation8 + $0x164] sm:$0xf]
    %v1167 = vld [vmem:[#allocation8 + $0x168] sm:$0xf]
    %v1168 = vld [vmem:[#allocation8 + $0x16c] sm:$0xf]
    %v1169 = vld [vmem:[#allocation8 + $0x170] sm:$0xf]
    %v1170 = vld [vmem:[#allocation8 + $0x174] sm:$0xf]
    %v1171 = vld [vmem:[#allocation8 + $0x178] sm:$0xf]
    %v1172 = vld [vmem:[#allocation8 + $0x17c] sm:$0xf]
    %v1173 = vld [vmem:[#allocation8 + $0x180] sm:$0xf]
    %v1174 = vld [vmem:[#allocation8 + $0x184] sm:$0xf]
    %v1175 = vld [vmem:[#allocation8 + $0x188] sm:$0xf]
    %v1176 = vld [vmem:[#allocation8 + $0x18c] sm:$0xf]
    %v1177 = vld [vmem:[#allocation8 + $0x190] sm:$0xf]
    %v1178 = vld [vmem:[#allocation8 + $0x194] sm:$0xf]
    %v1179 = vld [vmem:[#allocation8 + $0x198] sm:$0xf]
    %v1180 = vld [vmem:[#allocation8 + $0x19c] sm:$0xf]
    %v1181 = vld [vmem:[#allocation8 + $0x1a0] sm:$0xf]
    %v1182 = vld [vmem:[#allocation8 + $0x1a4] sm:$0xf]
    %v1183 = vld [vmem:[#allocation8 + $0x1a8] sm:$0xf]
    %v1184 = vld [vmem:[#allocation8 + $0x1ac] sm:$0xf]
    %v1185 = vld [vmem:[#allocation8 + $0x1b0] sm:$0xf]
    %v1186 = vld [vmem:[#allocation8 + $0x1b4] sm:$0xf]
    %v1187 = vld [vmem:[#allocation8 + $0x1b8] sm:$0xf]
    %v1188 = vld [vmem:[#allocation8 + $0x1bc] sm:$0xf]
    %v1189 = vld [vmem:[#allocation8 + $0x1c0] sm:$0xf]
    %v1190 = vld [vmem:[#allocation8 + $0x1c4] sm:$0xf]
    %v1191 = vld [vmem:[#allocation8 + $0x1c8] sm:$0xf]
    %v1192 = vld [vmem:[#allocation8 + $0x1cc] sm:$0xf]
    %v1193 = vld [vmem:[#allocation8 + $0x1d0] sm:$0xf]
    %v1194 = vld [vmem:[#allocation8 + $0x1d4] sm:$0xf]
    %v1195 = vld [vmem:[#allocation8 + $0x1d8] sm:$0xf]
    %v1196 = vld [vmem:[#allocation8 + $0x1dc] sm:$0xf]
    %v1197 = vld [vmem:[#allocation8 + $0x1e0] sm:$0xf]
    %v1198 = vld [vmem:[#allocation8 + $0x1e4] sm:$0xf]
    %v1199 = vld [vmem:[#allocation8 + $0x1e8] sm:$0xf]
    %v1200 = vld [vmem:[#allocation8 + $0x1ec] sm:$0xf]
    %v1201 = vld [vmem:[#allocation8 + $0x1f0] sm:$0xf]
    %v1202 = vld [vmem:[#allocation8 + $0x1f4] sm:$0xf]
    %v1203 = vld [vmem:[#allocation8 + $0x1f8] sm:$0xf]
    %v1204 = vld [vmem:[#allocation8 + $0x1fc] sm:$0xf]
    %v1205 = vld [vmem:[%s4] sm:$0x1]
    %v1207 = vlaneseq
    %v1208 = vshrl.u32 %v1207, 7
    %v1209 = vsub.s32 0, %v1208
    %v1210 = vrot.slane %v1205, %v1209
    %v1340 = vunpack.c.l.b16 %v1077
    %v1341 = vunpack.c.l.b16 %v1078
    %v1342 = vunpack.c.l.b16 %v1079
    %v1343 = vunpack.c.l.b16 %v1080
    %v1344 = vunpack.c.l.b16 %v1081
    %v1345 = vunpack.c.l.b16 %v1082
    %v1346 = vunpack.c.l.b16 %v1083
    %v1347 = vunpack.c.l.b16 %v1084
    %v1348 = vunpack.c.l.b16 %v1085
    %v1349 = vunpack.c.l.b16 %v1086
    %v1350 = vunpack.c.l.b16 %v1087
    %v1351 = vunpack.c.l.b16 %v1088
    %v1352 = vunpack.c.l.b16 %v1089
    %v1353 = vunpack.c.l.b16 %v1090
    %v1354 = vunpack.c.l.b16 %v1091
    %v1355 = vunpack.c.l.b16 %v1092
    %v1356 = vunpack.c.l.b16 %v1093
    %v1357 = vunpack.c.l.b16 %v1094
    %v1358 = vunpack.c.l.b16 %v1095
    %v1359 = vunpack.c.l.b16 %v1096
    %v1360 = vunpack.c.l.b16 %v1097
    %v1361 = vunpack.c.l.b16 %v1098
    %v1362 = vunpack.c.l.b16 %v1099
    %v1363 = vunpack.c.l.b16 %v1100
    %v1364 = vunpack.c.l.b16 %v1101
    %v1365 = vunpack.c.l.b16 %v1102
    %v1366 = vunpack.c.l.b16 %v1103
    %v1367 = vunpack.c.l.b16 %v1104
    %v1368 = vunpack.c.l.b16 %v1105
    %v1369 = vunpack.c.l.b16 %v1106
    %v1370 = vunpack.c.l.b16 %v1107
    %v1371 = vunpack.c.l.b16 %v1108
    %v1372 = vunpack.c.l.b16 %v1109
    %v1373 = vunpack.c.l.b16 %v1110
    %v1374 = vunpack.c.l.b16 %v1111
    %v1375 = vunpack.c.l.b16 %v1112
    %v1376 = vunpack.c.l.b16 %v1113
    %v1377 = vunpack.c.l.b16 %v1114
    %v1378 = vunpack.c.l.b16 %v1115
    %v1379 = vunpack.c.l.b16 %v1116
    %v1380 = vunpack.c.l.b16 %v1117
    %v1381 = vunpack.c.l.b16 %v1118
    %v1382 = vunpack.c.l.b16 %v1119
    %v1383 = vunpack.c.l.b16 %v1120
    %v1384 = vunpack.c.l.b16 %v1121
    %v1385 = vunpack.c.l.b16 %v1122
    %v1386 = vunpack.c.l.b16 %v1123
    %v1387 = vunpack.c.l.b16 %v1124
    %v1388 = vunpack.c.l.b16 %v1125
    %v1389 = vunpack.c.l.b16 %v1126
    %v1390 = vunpack.c.l.b16 %v1127
    %v1391 = vunpack.c.l.b16 %v1128
    %v1392 = vunpack.c.l.b16 %v1129
    %v1393 = vunpack.c.l.b16 %v1130
    %v1394 = vunpack.c.l.b16 %v1131
    %v1395 = vunpack.c.l.b16 %v1132
    %v1396 = vunpack.c.l.b16 %v1133
    %v1397 = vunpack.c.l.b16 %v1134
    %v1398 = vunpack.c.l.b16 %v1135
    %v1399 = vunpack.c.l.b16 %v1136
    %v1400 = vunpack.c.l.b16 %v1137
    %v1401 = vunpack.c.l.b16 %v1138
    %v1402 = vunpack.c.l.b16 %v1139
    %v1403 = vunpack.c.l.b16 %v1140
    %v1404 = vunpack.c.l.b16 %v1141
    %v1405 = vunpack.c.l.b16 %v1142
    %v1406 = vunpack.c.l.b16 %v1143
    %v1407 = vunpack.c.l.b16 %v1144
    %v1408 = vunpack.c.l.b16 %v1145
    %v1409 = vunpack.c.l.b16 %v1146
    %v1410 = vunpack.c.l.b16 %v1147
    %v1411 = vunpack.c.l.b16 %v1148
    %v1412 = vunpack.c.l.b16 %v1149
    %v1413 = vunpack.c.l.b16 %v1150
    %v1414 = vunpack.c.l.b16 %v1151
    %v1415 = vunpack.c.l.b16 %v1152
    %v1416 = vunpack.c.l.b16 %v1153
    %v1417 = vunpack.c.l.b16 %v1154
    %v1418 = vunpack.c.l.b16 %v1155
    %v1419 = vunpack.c.l.b16 %v1156
    %v1420 = vunpack.c.l.b16 %v1157
    %v1421 = vunpack.c.l.b16 %v1158
    %v1422 = vunpack.c.l.b16 %v1159
    %v1423 = vunpack.c.l.b16 %v1160
    %v1424 = vunpack.c.l.b16 %v1161
    %v1425 = vunpack.c.l.b16 %v1162
    %v1426 = vunpack.c.l.b16 %v1163
    %v1427 = vunpack.c.l.b16 %v1164
    %v1428 = vunpack.c.l.b16 %v1165
    %v1429 = vunpack.c.l.b16 %v1166
    %v1430 = vunpack.c.l.b16 %v1167
    %v1431 = vunpack.c.l.b16 %v1168
    %v1432 = vunpack.c.l.b16 %v1169
    %v1433 = vunpack.c.l.b16 %v1170
    %v1434 = vunpack.c.l.b16 %v1171
    %v1435 = vunpack.c.l.b16 %v1172
    %v1436 = vunpack.c.l.b16 %v1173
    %v1437 = vunpack.c.l.b16 %v1174
    %v1438 = vunpack.c.l.b16 %v1175
    %v1439 = vunpack.c.l.b16 %v1176
    %v1440 = vunpack.c.l.b16 %v1177
    %v1441 = vunpack.c.l.b16 %v1178
    %v1442 = vunpack.c.l.b16 %v1179
    %v1443 = vunpack.c.l.b16 %v1180
    %v1444 = vunpack.c.l.b16 %v1181
    %v1445 = vunpack.c.l.b16 %v1182
    %v1446 = vunpack.c.l.b16 %v1183
    %v1447 = vunpack.c.l.b16 %v1184
    %v1448 = vunpack.c.l.b16 %v1185
    %v1449 = vunpack.c.l.b16 %v1186
    %v1450 = vunpack.c.l.b16 %v1187
    %v1451 = vunpack.c.l.b16 %v1188
    %v1452 = vunpack.c.l.b16 %v1189
    %v1453 = vunpack.c.l.b16 %v1190
    %v1454 = vunpack.c.l.b16 %v1191
    %v1455 = vunpack.c.l.b16 %v1192
    %v1456 = vunpack.c.l.b16 %v1193
    %v1457 = vunpack.c.l.b16 %v1194
    %v1458 = vunpack.c.l.b16 %v1195
    %v1459 = vunpack.c.l.b16 %v1196
    %v1460 = vunpack.c.l.b16 %v1197
    %v1461 = vunpack.c.l.b16 %v1198
    %v1462 = vunpack.c.l.b16 %v1199
    %v1463 = vunpack.c.l.b16 %v1200
    %v1464 = vunpack.c.l.b16 %v1201
    %v1465 = vunpack.c.l.b16 %v1202
    %v1466 = vunpack.c.l.b16 %v1203
    %v1467 = vunpack.c.l.b16 %v1204
    %v1468 = vpack.c.b16 %v1341, %v1340
    %v1469 = vpack.c.b16 %v1343, %v1342
    %v1470 = vpack.c.b16 %v1345, %v1344
    %v1471 = vpack.c.b16 %v1347, %v1346
    %v1472 = vpack.c.b16 %v1349, %v1348
    %v1473 = vpack.c.b16 %v1351, %v1350
    %v1474 = vpack.c.b16 %v1353, %v1352
    %v1475 = vpack.c.b16 %v1355, %v1354
    %v1476 = vpack.c.b16 %v1357, %v1356
    %v1477 = vpack.c.b16 %v1359, %v1358
    %v1478 = vpack.c.b16 %v1361, %v1360
    %v1479 = vpack.c.b16 %v1363, %v1362
    %v1480 = vpack.c.b16 %v1365, %v1364
    %v1481 = vpack.c.b16 %v1367, %v1366
    %v1482 = vpack.c.b16 %v1369, %v1368
    %v1483 = vpack.c.b16 %v1371, %v1370
    %v1484 = vpack.c.b16 %v1373, %v1372
    %v1485 = vpack.c.b16 %v1375, %v1374
    %v1486 = vpack.c.b16 %v1377, %v1376
    %v1487 = vpack.c.b16 %v1379, %v1378
    %v1488 = vpack.c.b16 %v1381, %v1380
    %v1489 = vpack.c.b16 %v1383, %v1382
    %v1490 = vpack.c.b16 %v1385, %v1384
    %v1491 = vpack.c.b16 %v1387, %v1386
    %v1492 = vpack.c.b16 %v1389, %v1388
    %v1493 = vpack.c.b16 %v1391, %v1390
    %v1494 = vpack.c.b16 %v1393, %v1392
    %v1495 = vpack.c.b16 %v1395, %v1394
    %v1496 = vpack.c.b16 %v1397, %v1396
    %v1497 = vpack.c.b16 %v1399, %v1398
    %v1498 = vpack.c.b16 %v1401, %v1400
    %v1499 = vpack.c.b16 %v1403, %v1402
    %v1500 = vpack.c.b16 %v1405, %v1404
    %v1501 = vpack.c.b16 %v1407, %v1406
    %v1502 = vpack.c.b16 %v1409, %v1408
    %v1503 = vpack.c.b16 %v1411, %v1410
    %v1504 = vpack.c.b16 %v1413, %v1412
    %v1505 = vpack.c.b16 %v1415, %v1414
    %v1506 = vpack.c.b16 %v1417, %v1416
    %v1507 = vpack.c.b16 %v1419, %v1418
    %v1508 = vpack.c.b16 %v1421, %v1420
    %v1509 = vpack.c.b16 %v1423, %v1422
    %v1510 = vpack.c.b16 %v1425, %v1424
    %v1511 = vpack.c.b16 %v1427, %v1426
    %v1512 = vpack.c.b16 %v1429, %v1428
    %v1513 = vpack.c.b16 %v1431, %v1430
    %v1514 = vpack.c.b16 %v1433, %v1432
    %v1515 = vpack.c.b16 %v1435, %v1434
    %v1516 = vpack.c.b16 %v1437, %v1436
    %v1517 = vpack.c.b16 %v1439, %v1438
    %v1518 = vpack.c.b16 %v1441, %v1440
    %v1519 = vpack.c.b16 %v1443, %v1442
    %v1520 = vpack.c.b16 %v1445, %v1444
    %v1521 = vpack.c.b16 %v1447, %v1446
    %v1522 = vpack.c.b16 %v1449, %v1448
    %v1523 = vpack.c.b16 %v1451, %v1450
    %v1524 = vpack.c.b16 %v1453, %v1452
    %v1525 = vpack.c.b16 %v1455, %v1454
    %v1526 = vpack.c.b16 %v1457, %v1456
    %v1527 = vpack.c.b16 %v1459, %v1458
    %v1528 = vpack.c.b16 %v1461, %v1460
    %v1529 = vpack.c.b16 %v1463, %v1462
    %v1530 = vpack.c.b16 %v1465, %v1464
    %v1531 = vpack.c.b16 %v1467, %v1466
    %1596 = vmatprep.subr.bf16.mxu0 0
    %1597 = vmatpush1.bf16.msra.mxu0 %v1468
    %1598 = vmatprep.subr.bf16.mxu0 0
    %1599 = vmatpush1.bf16.msra.mxu0 %v1469
    %1600 = vmatprep.subr.bf16.mxu0 0
    %1601 = vmatpush1.bf16.msra.mxu0 %v1470
    %1602 = vmatprep.subr.bf16.mxu0 0
    %1603 = vmatpush1.bf16.msra.mxu0 %v1471
    %1604 = vmatprep.subr.bf16.mxu0 0
    %1605 = vmatpush1.bf16.msra.mxu0 %v1472
    %1606 = vmatprep.subr.bf16.mxu0 0
    %1607 = vmatpush1.bf16.msra.mxu0 %v1473
    %1608 = vmatprep.subr.bf16.mxu0 0
    %1609 = vmatpush1.bf16.msra.mxu0 %v1474
    %1610 = vmatprep.subr.bf16.mxu0 0
    %1611 = vmatpush1.bf16.msra.mxu0 %v1475
    %1612 = vmatprep.subr.bf16.mxu0 0
    %1613 = vmatpush1.bf16.msra.mxu0 %v1476
    %1614 = vmatprep.subr.bf16.mxu0 0
    %1615 = vmatpush1.bf16.msra.mxu0 %v1477
    %1616 = vmatprep.subr.bf16.mxu0 0
    %1617 = vmatpush1.bf16.msra.mxu0 %v1478
    %1618 = vmatprep.subr.bf16.mxu0 0
    %1619 = vmatpush1.bf16.msra.mxu0 %v1479
    %1620 = vmatprep.subr.bf16.mxu0 0
    %1621 = vmatpush1.bf16.msra.mxu0 %v1480
    %1622 = vmatprep.subr.bf16.mxu0 0
    %1623 = vmatpush1.bf16.msra.mxu0 %v1481
    %1624 = vmatprep.subr.bf16.mxu0 0
    %1625 = vmatpush1.bf16.msra.mxu0 %v1482
    %1626 = vmatprep.subr.bf16.mxu0 0
    %1627 = vmatpush1.bf16.msra.mxu0 %v1483
    %1628 = vmatprep.mubr.bf16.mxu0 %v1070
    %1629 = vmatmul.mubr.bf16.gmra.mrb[0].mxu0 %v1069
    %v1630 = vpop.f32.mrb[0].mxu0
    %v1631 = vadd.f32 %v1210, %v1630
    %v1632 = vpop.f32.mrb[0].mxu0
    %v1633 = vpop.f32.mrb[0].mxu0
    %v1634 = vpop.f32.mrb[0].mxu0
    %1635 = vdwg.mxu0
    %1636 = vmatprep.subr.bf16.mxu0 0
    %1637 = vmatpush1.bf16.msra.mxu0 %v1484
    %1638 = vmatprep.subr.bf16.mxu0 0
    %1639 = vmatpush1.bf16.msra.mxu0 %v1485
    %1640 = vmatprep.subr.bf16.mxu0 0
    %1641 = vmatpush1.bf16.msra.mxu0 %v1486
    %1642 = vmatprep.subr.bf16.mxu0 0
    %1643 = vmatpush1.bf16.msra.mxu0 %v1487
    %1644 = vmatprep.subr.bf16.mxu0 0
    %1645 = vmatpush1.bf16.msra.mxu0 %v1488
    %1646 = vmatprep.subr.bf16.mxu0 0
    %1647 = vmatpush1.bf16.msra.mxu0 %v1489
    %1648 = vmatprep.subr.bf16.mxu0 0
    %1649 = vmatpush1.bf16.msra.mxu0 %v1490
    %1650 = vmatprep.subr.bf16.mxu0 0
    %1651 = vmatpush1.bf16.msra.mxu0 %v1491
    %1652 = vmatprep.subr.bf16.mxu0 0
    %1653 = vmatpush1.bf16.msra.mxu0 %v1492
    %1654 = vmatprep.subr.bf16.mxu0 0
    %1655 = vmatpush1.bf16.msra.mxu0 %v1493
    %1656 = vmatprep.subr.bf16.mxu0 0
    %1657 = vmatpush1.bf16.msra.mxu0 %v1494
    %1658 = vmatprep.subr.bf16.mxu0 0
    %1659 = vmatpush1.bf16.msra.mxu0 %v1495
    %1660 = vmatprep.subr.bf16.mxu0 0
    %1661 = vmatpush1.bf16.msra.mxu0 %v1496
    %1662 = vmatprep.subr.bf16.mxu0 0
    %1663 = vmatpush1.bf16.msra.mxu0 %v1497
    %1664 = vmatprep.subr.bf16.mxu0 0
    %1665 = vmatpush1.bf16.msra.mxu0 %v1498
    %1666 = vmatprep.subr.bf16.mxu0 0
    %1667 = vmatpush1.bf16.msra.mxu0 %v1499
    %1668 = vmatprep.mubr.bf16.mxu0 %v1072
    %1669 = vmatmul.mubr.bf16.gmra.mrb[0].mxu0 %v1071
    %v1670 = vpop.f32.mrb[0].mxu0
    %v1671 = vadd.f32 %v1631, %v1670
    %v1672 = vpop.f32.mrb[0].mxu0
    %v1673 = vpop.f32.mrb[0].mxu0
    %v1674 = vpop.f32.mrb[0].mxu0
    %1675 = vdwg.mxu0
    %1676 = vmatprep.subr.bf16.mxu0 0
    %1677 = vmatpush1.bf16.msra.mxu0 %v1500
    %1678 = vmatprep.subr.bf16.mxu0 0
    %1679 = vmatpush1.bf16.msra.mxu0 %v1501
    %1680 = vmatprep.subr.bf16.mxu0 0
    %1681 = vmatpush1.bf16.msra.mxu0 %v1502
    %1682 = vmatprep.subr.bf16.mxu0 0
    %1683 = vmatpush1.bf16.msra.mxu0 %v1503
    %1684 = vmatprep.subr.bf16.mxu0 0
    %1685 = vmatpush1.bf16.msra.mxu0 %v1504
    %1686 = vmatprep.subr.bf16.mxu0 0
    %1687 = vmatpush1.bf16.msra.mxu0 %v1505
    %1688 = vmatprep.subr.bf16.mxu0 0
    %1689 = vmatpush1.bf16.msra.mxu0 %v1506
    %1690 = vmatprep.subr.bf16.mxu0 0
    %1691 = vmatpush1.bf16.msra.mxu0 %v1507
    %1692 = vmatprep.subr.bf16.mxu0 0
    %1693 = vmatpush1.bf16.msra.mxu0 %v1508
    %1694 = vmatprep.subr.bf16.mxu0 0
    %1695 = vmatpush1.bf16.msra.mxu0 %v1509
    %1696 = vmatprep.subr.bf16.mxu0 0
    %1697 = vmatpush1.bf16.msra.mxu0 %v1510
    %1698 = vmatprep.subr.bf16.mxu0 0
    %1699 = vmatpush1.bf16.msra.mxu0 %v1511
    %1700 = vmatprep.subr.bf16.mxu0 0
    %1701 = vmatpush1.bf16.msra.mxu0 %v1512
    %1702 = vmatprep.subr.bf16.mxu0 0
    %1703 = vmatpush1.bf16.msra.mxu0 %v1513
    %1704 = vmatprep.subr.bf16.mxu0 0
    %1705 = vmatpush1.bf16.msra.mxu0 %v1514
    %1706 = vmatprep.subr.bf16.mxu0 0
    %1707 = vmatpush1.bf16.msra.mxu0 %v1515
    %1708 = vmatprep.mubr.bf16.mxu0 %v1074
    %1709 = vmatmul.mubr.bf16.gmra.mrb[0].mxu0 %v1073
    %v1710 = vpop.f32.mrb[0].mxu0
    %v1711 = vadd.f32 %v1671, %v1710
    %v1712 = vpop.f32.mrb[0].mxu0
    %v1713 = vpop.f32.mrb[0].mxu0
    %v1714 = vpop.f32.mrb[0].mxu0
    %1715 = vdwg.mxu0
    %1716 = vmatprep.subr.bf16.mxu0 0
    %1717 = vmatpush1.bf16.msra.mxu0 %v1516
    %1718 = vmatprep.subr.bf16.mxu0 0
    %1719 = vmatpush1.bf16.msra.mxu0 %v1517
    %1720 = vmatprep.subr.bf16.mxu0 0
    %1721 = vmatpush1.bf16.msra.mxu0 %v1518
    %1722 = vmatprep.subr.bf16.mxu0 0
    %1723 = vmatpush1.bf16.msra.mxu0 %v1519
    %1724 = vmatprep.subr.bf16.mxu0 0
    %1725 = vmatpush1.bf16.msra.mxu0 %v1520
    %1726 = vmatprep.subr.bf16.mxu0 0
    %1727 = vmatpush1.bf16.msra.mxu0 %v1521
    %1728 = vmatprep.subr.bf16.mxu0 0
    %1729 = vmatpush1.bf16.msra.mxu0 %v1522
    %1730 = vmatprep.subr.bf16.mxu0 0
    %1731 = vmatpush1.bf16.msra.mxu0 %v1523
    %1732 = vmatprep.subr.bf16.mxu0 0
    %1733 = vmatpush1.bf16.msra.mxu0 %v1524
    %1734 = vmatprep.subr.bf16.mxu0 0
    %1735 = vmatpush1.bf16.msra.mxu0 %v1525
    %1736 = vmatprep.subr.bf16.mxu0 0
    %1737 = vmatpush1.bf16.msra.mxu0 %v1526
    %1738 = vmatprep.subr.bf16.mxu0 0
    %1739 = vmatpush1.bf16.msra.mxu0 %v1527
    %1740 = vmatprep.subr.bf16.mxu0 0
    %1741 = vmatpush1.bf16.msra.mxu0 %v1528
    %1742 = vmatprep.subr.bf16.mxu0 0
    %1743 = vmatpush1.bf16.msra.mxu0 %v1529
    %1744 = vmatprep.subr.bf16.mxu0 0
    %1745 = vmatpush1.bf16.msra.mxu0 %v1530
    %1746 = vmatprep.subr.bf16.mxu0 0
    %1747 = vmatpush1.bf16.msra.mxu0 %v1531
    %1748 = vmatprep.mubr.bf16.mxu0 %v1076
    %1749 = vmatmul.mubr.bf16.gmra.mrb[0].mxu0 %v1075
    %v1750 = vpop.f32.mrb[0].mxu0
    %v1751 = vadd.f32 %v1711, %v1750
    %v1752 = vpop.f32.mrb[0].mxu0
    %v1753 = vpop.f32.mrb[0].mxu0
    %v1754 = vpop.f32.mrb[0].mxu0
    %1755 = vdwg.mxu0
    %vm1756 = vcmask 1041408
    %v1757 = vsel %vm1756, %v1751, -inf
    %1758 = vmax.xlane.f32.xlu0 %v1757
    %v1759 = vpop.xlane.xlu0 %1758
    %v1760 = vsub.f32 %v1751, %v1759
    %v1761 = vmul.f32 %v1760, 1.442695
    %v1762 = vpow.pop %v1761
    %v1763 = vsel %vm1756, %v1762, 0.0
    %1764 = vadd.xlane.f32.xlu0 %v1763
    %v1765 = vpop.xlane.xlu0 %1764
    %v1766 = vrcp.pop %v1765
    %v1767 = vmul.f32 %v1762, %v1766
    %1768 = vst [vmem:[#allocation10] sm:$0x3] %v1767
    // Predicated region
    $region38: #{tpu_custom_call.1} parent=1 // pred_check
      _
    $region39: #{tpu_custom_call.1} parent=1 // pred_check_branch
      %1770 = sbr.rel (0) target = $region41
    $region40: #{tpu_custom_call.1} parent=1 // pred_region
      %s1772 = ssub.s32 32, 32
      %1773 = vsyncadd [#allocation4], %s1772
      %s1775 = sshll.u32 [#allocation10], 4
      %s1776 = int_to_ptr.vmem [resolvable:$true] %s1775
      %1778 = dma.vmem_to_hbm [thread:$0]  %s1776, 32, %s5, [#allocation4]
    $region41: #{tpu_custom_call.1} parent=1 // pred_fallthru
      _
    // Predicated region
    $region42: #{tpu_custom_call.1} parent=1 // pred_check
      _
    $region43: #{tpu_custom_call.1} parent=1 // pred_check_branch
      %1780 = sbr.rel (0) target = $region45
    $region44: #{tpu_custom_call.1} parent=1 // pred_region
      %1781 = dma.done [#allocation4], 32
    $region45: #{tpu_custom_call.1} parent=1 // pred_fallthru
      _
    %1782 = vsyncpa [#allocation3], 1
    %1783 = vsyncpa [#allocation6], 1
    %1784 = vsyncpa [#allocation9], 1
    %1785 = vsyncpa [#allocation4], 1

</llo_original>
